<compile_context>
chip_gen: v6e
topology: v6e:2x2x1
jax: 0.10.0
libtpu: 0.0.40
codegen_flags: <defaults>
</compile_context>

<pallas_src>
import functools

import jax
import jax.numpy as jnp
from jax import lax
from jax.experimental import pallas as pl
from jax.experimental.pallas import tpu as pltpu


# ----------------------------------------------------------------------------
# Pallas kernel: one bidirectional LSTM layer.  Grid axis 0 = direction
# (0 = forward, 1 = backward); each direction is fully independent, so the
# axis is marked "parallel" (2x on v7x's two TensorCores).
#
#   gx_ref  : (S, B, 4H)  precomputed x @ W_ih + (b_ih + b_hh) for this direction
#   whh_ref : (H, 4H)     hidden->gates weight for this direction
#   y_ref   : (S, B, H)   per-step hidden outputs, stored in original time order
#   hn_ref  : (B, H)      final hidden state for this direction
#   cn_ref  : (B, H)      final cell state for this direction
# ----------------------------------------------------------------------------
def _bilstm_layer_kernel(gx_ref, whh_ref, y_ref, hn_ref, cn_ref):
    d = pl.program_id(0)                 # 0: forward, 1: backward
    S, B, _ = gx_ref.shape
    H = whh_ref.shape[0]
    whh = whh_ref[...]                   # keep resident in vregs/VMEM across steps

    def step(i, carry):
        h, c = carry
        # Forward walks t = 0..S-1, backward walks t = S-1..0 (no flips needed).
        t = jnp.where(d == 0, i, S - 1 - i)
        gates = gx_ref[t] + jnp.dot(h, whh, preferred_element_type=jnp.float32)
        i_g = jax.nn.sigmoid(gates[:, 0 * H:1 * H])
        f_g = jax.nn.sigmoid(gates[:, 1 * H:2 * H])
        g_g = jnp.tanh(gates[:, 2 * H:3 * H])
        o_g = jax.nn.sigmoid(gates[:, 3 * H:4 * H])
        c_new = f_g * c + i_g * g_g
        h_new = o_g * jnp.tanh(c_new)
        y_ref[t] = h_new                 # stored at the original time index
        return h_new, c_new

    h0 = jnp.zeros((B, H), jnp.float32)
    c0 = jnp.zeros((B, H), jnp.float32)
    # Unrolled in-kernel time loop (S is small and static here; block the time
    # axis instead for long sequences).
    h_fin, c_fin = lax.fori_loop(0, S, step, (h0, c0), unroll=True)

    hn_ref[...] = h_fin
    cn_ref[...] = c_fin


def bilstm_layer(gx, whh):
    """One bidirectional LSTM layer over a full sequence.

    gx : (2, S, B, 4H) float32  precomputed input-gate pre-activations per direction.
    whh: (2, H, 4H)    float32  recurrent weights per direction.
    Returns (y (2, S, B, H), h_n (2, B, H), c_n (2, B, H)); axis 0 = [fwd, bwd].
    """
    _, S, B, G = gx.shape
    H = whh.shape[1]

    grid_spec = pltpu.PrefetchScalarGridSpec(
        num_scalar_prefetch=0,
        grid=(2,),                                            # direction axis only
        in_specs=[
            pl.BlockSpec((None, S, B, G), lambda d: (d, 0, 0, 0)),
            pl.BlockSpec((None, H, G), lambda d: (d, 0, 0)),
        ],
        out_specs=[
            pl.BlockSpec((None, S, B, H), lambda d: (d, 0, 0, 0)),
            pl.BlockSpec((None, B, H), lambda d: (d, 0, 0)),
            pl.BlockSpec((None, B, H), lambda d: (d, 0, 0)),
        ],
    )

    return pl.pallas_call(
        _bilstm_layer_kernel,
        grid_spec=grid_spec,
        out_shape=(
            jax.ShapeDtypeStruct((2, S, B, H), jnp.float32),
            jax.ShapeDtypeStruct((2, B, H), jnp.float32),
            jax.ShapeDtypeStruct((2, B, H), jnp.float32),
        ),
        compiler_params=pltpu.CompilerParams(
            # Directions are independent -> safe to split across TensorCores (v7x).
            dimension_semantics=("parallel",),
            vmem_limit_bytes=32 * 1024 * 1024,
        ),
    )(gx, whh)


# ----------------------------------------------------------------------------
# Parameter init (deterministic, PyTorch-like uniform(-1/sqrt(H), 1/sqrt(H))).
# Weights are stored stacked per direction and pre-transposed vs. PyTorch
# ((in_dim, 4H) / (H, 4H)) with b = b_ih + b_hh folded.
# ----------------------------------------------------------------------------
def init_params(key, vocab_size, embedding_size, hidden_size, num_layers):
    k_emb, k_rnn = jax.random.split(key)
    params = {
        "embedding": jax.random.normal(
            k_emb, (vocab_size, embedding_size), dtype=jnp.float32),
        "layers": [],
    }
    bound = 1.0 / float(hidden_size) ** 0.5
    keys = jax.random.split(k_rnn, num_layers * 2 * 4)
    ki = 0
    for layer in range(num_layers):
        in_dim = embedding_size if layer == 0 else 2 * hidden_size
        wih_d, whh_d, b_d = [], [], []
        for _dir in range(2):  # forward, backward
            wih = jax.random.uniform(keys[ki], (in_dim, 4 * hidden_size),
                                     jnp.float32, -bound, bound); ki += 1
            whh = jax.random.uniform(keys[ki], (hidden_size, 4 * hidden_size),
                                     jnp.float32, -bound, bound); ki += 1
            b_ih = jax.random.uniform(keys[ki], (4 * hidden_size,),
                                      jnp.float32, -bound, bound); ki += 1
            b_hh = jax.random.uniform(keys[ki], (4 * hidden_size,),
                                      jnp.float32, -bound, bound); ki += 1
            wih_d.append(wih); whh_d.append(whh); b_d.append(b_ih + b_hh)
        params["layers"].append({
            "wih": jnp.stack(wih_d, axis=0),   # (2, in_dim, 4H)
            "whh": jnp.stack(whh_d, axis=0),   # (2, H, 4H)
            "b":   jnp.stack(b_d, axis=0),     # (2, 4H)
        })
    return params


# ----------------------------------------------------------------------------
# Full EncoderRNN forward.
# ----------------------------------------------------------------------------
@functools.partial(jax.jit, static_argnums=(2,))
def encoder_rnn_forward(tokens, params, num_layers):
    # Embedding lookup (gather stays in plain JAX).
    emb = params["embedding"][tokens]            # (B, S, E), batch_first
    # Dropout: evaluated in inference mode -> identity.
    x = jnp.transpose(emb, (1, 0, 2))            # (S, B, E), time-major

    h_list, c_list = [], []
    y = None
    for layer in range(num_layers):
        lp = params["layers"][layer]
        wih, whh, b = lp["wih"], lp["whh"], lp["b"]
        H = whh.shape[1]
        # Hoisted input projection: one big matmul over all S*B rows per direction.
        if layer == 0:
            gx = jnp.einsum("sbe,deg->dsbg", x, wih,
                            preferred_element_type=jnp.float32)
        else:
            # Previous layer output is direction-major (2, S, B, H); consume it
            # directly (no concat) by splitting W_ih's 2H input dim per direction.
            wih_r = wih.reshape(2, 2, H, 4 * H)   # (out_dir, in_dir, H, 4H)
            gx = jnp.einsum("psbh,dphg->dsbg", y, wih_r,
                            preferred_element_type=jnp.float32)
        gx = gx + b[:, None, None, :]             # fold b_ih + b_hh for free

        y, hn, cn = bilstm_layer(gx, whh)         # y: (2, S, B, H)
        h_list.append(hn)
        c_list.append(cn)

    B, S = tokens.shape
    H = y.shape[-1]
    # (2, S, B, H) -> (B, S, 2H) with [fwd | bwd] halves, batch_first like PyTorch.
    output = jnp.transpose(y, (2, 1, 0, 3)).reshape(B, S, 2 * H)
    # PyTorch ordering: [l0_fwd, l0_bwd, l1_fwd, l1_bwd, ...]
    h_n = jnp.concatenate(h_list, axis=0)         # (num_layers*2, B, H)
    c_n = jnp.concatenate(c_list, axis=0)         # (num_layers*2, B, H)
    return output, (h_n, c_n)


if __name__ == "__main__":
    # Small, consistent shapes: vocab=16, embedding=32, hidden=32, B=2, S=8.
    # (For production perf, H should be a multiple of 128 and B >= 8.)
    VOCAB, EMB, HID, LAYERS = 16, 32, 32, 3
    B, S = 2, 8

    key = jax.random.PRNGKey(0)
    k_tok, k_par = jax.random.split(key)
    tokens = jax.random.randint(k_tok, (B, S), 0, VOCAB, dtype=jnp.int32)
    params = init_params(k_par, VOCAB, EMB, HID, LAYERS)

    output, (h_n, c_n) = encoder_rnn_forward(tokens, params, LAYERS)
    jax.block_until_ready((output, h_n, c_n))

    assert output.shape == (B, S, 2 * HID), output.shape
    assert h_n.shape == (LAYERS * 2, B, HID), h_n.shape
    assert c_n.shape == (LAYERS * 2, B, HID), c_n.shape
    print("KERNEL_OK")
</pallas_src>

<mosaic_0001>
module attributes {stable_mosaic.version = 11 : i64} {
  func.func @_bilstm_layer_kernel(%arg0: i32, %arg1: memref<1x8x2x128xf32, #tpu.memory_space<vmem>>, %arg2: memref<1x32x128xf32, #tpu.memory_space<vmem>>, %arg3: memref<1x8x2x32xf32, #tpu.memory_space<vmem>>, %arg4: memref<1x2x32xf32, #tpu.memory_space<vmem>>, %arg5: memref<1x2x32xf32, #tpu.memory_space<vmem>>) attributes {dimension_semantics = [#tpu.dimension_semantics<parallel>], iteration_bounds = array<i64: 2>, scalar_prefetch = 0 : i64, scratch_operands = 0 : i64, tpu.core_type = #tpu.core_type<tc>, window_params = [{transform_indices = @transform_0, window_bounds = array<i64: 1, 8, 2, 128>}, {transform_indices = @transform_1, window_bounds = array<i64: 1, 32, 128>}, {transform_indices = @transform_2, window_bounds = array<i64: 1, 8, 2, 32>}, {transform_indices = @transform_3, window_bounds = array<i64: 1, 2, 32>}, {transform_indices = @transform_4, window_bounds = array<i64: 1, 2, 32>}]} {
    %c0 = arith.constant 0 : index
    %c0_0 = arith.constant 0 : index
    %c0_1 = arith.constant 0 : index
    %0 = vector.load %arg2[%c0, %c0_0, %c0_1] : memref<1x32x128xf32, #tpu.memory_space<vmem>>, vector<1x32x128xf32>
    %1 = vector.shape_cast %0 : vector<1x32x128xf32> to vector<32x128xf32>
    %cst = arith.constant 0.000000e+00 : f32
    %2 = vector.broadcast %cst : f32 to vector<2x32xf32>
    %cst_2 = arith.constant 0.000000e+00 : f32
    %3 = vector.broadcast %cst_2 : f32 to vector<2x32xf32>
    %c0_i32 = arith.constant 0 : i32
    %c0_i32_3 = arith.constant 0 : i32
    %4 = arith.cmpi eq, %arg0, %c0_i32_3 : i32
    %c7_i32 = arith.constant 7 : i32
    %5 = arith.subi %c7_i32, %c0_i32 : i32
    %6 = arith.select %4, %c0_i32, %5 : i32
    %c0_4 = arith.constant 0 : index
    %7 = arith.index_cast %6 : i32 to index
    %c0_5 = arith.constant 0 : index
    %c0_6 = arith.constant 0 : index
    %8 = vector.load %arg1[%c0_4, %7, %c0_5, %c0_6] : memref<1x8x2x128xf32, #tpu.memory_space<vmem>>, vector<1x1x2x128xf32>
    %9 = vector.shape_cast %8 : vector<1x1x2x128xf32> to vector<2x128xf32>
    %cst_7 = arith.constant dense<0.000000e+00> : vector<2x128xf32>
    %10 = tpu.matmul %2, %1, %cst_7 {dimension_numbers = #tpu.dot_dimension_numbers<[1], [0], [0], [1], [0, 0, 1, 1], [], []>} : vector<2x32xf32>, vector<32x128xf32>, vector<2x128xf32> -> vector<2x128xf32>
    %11 = arith.addf %9, %10 : vector<2x128xf32>
    %12 = vector.extract_strided_slice %11 {offsets = [0, 0], sizes = [2, 32], strides = [1, 1]} : vector<2x128xf32> to vector<2x32xf32>
    %13 = arith.negf %12 : vector<2x32xf32>
    %14 = math.exp %13 : vector<2x32xf32>
    %cst_8 = arith.constant 1.000000e+00 : f32
    %15 = vector.broadcast %cst_8 : f32 to vector<2x32xf32>
    %16 = arith.addf %15, %14 : vector<2x32xf32>
    %17 = arith.divf %15, %16 : vector<2x32xf32>
    %18 = vector.extract_strided_slice %11 {offsets = [0, 32], sizes = [2, 32], strides = [1, 1]} : vector<2x128xf32> to vector<2x32xf32>
    %19 = arith.negf %18 : vector<2x32xf32>
    %20 = math.exp %19 : vector<2x32xf32>
    %cst_9 = arith.constant 1.000000e+00 : f32
    %21 = vector.broadcast %cst_9 : f32 to vector<2x32xf32>
    %22 = arith.addf %21, %20 : vector<2x32xf32>
    %23 = arith.divf %21, %22 : vector<2x32xf32>
    %24 = vector.extract_strided_slice %11 {offsets = [0, 64], sizes = [2, 32], strides = [1, 1]} : vector<2x128xf32> to vector<2x32xf32>
    %25 = math.tanh %24 : vector<2x32xf32>
    %26 = vector.extract_strided_slice %11 {offsets = [0, 96], sizes = [2, 32], strides = [1, 1]} : vector<2x128xf32> to vector<2x32xf32>
    %27 = arith.negf %26 : vector<2x32xf32>
    %28 = math.exp %27 : vector<2x32xf32>
    %cst_10 = arith.constant 1.000000e+00 : f32
    %29 = vector.broadcast %cst_10 : f32 to vector<2x32xf32>
    %30 = arith.addf %29, %28 : vector<2x32xf32>
    %31 = arith.divf %29, %30 : vector<2x32xf32>
    %32 = arith.mulf %23, %3 : vector<2x32xf32>
    %33 = arith.mulf %17, %25 : vector<2x32xf32>
    %34 = arith.addf %32, %33 : vector<2x32xf32>
    %35 = math.tanh %34 : vector<2x32xf32>
    %36 = arith.mulf %31, %35 : vector<2x32xf32>
    %c0_11 = arith.constant 0 : index
    %37 = arith.index_cast %6 : i32 to index
    %c0_12 = arith.constant 0 : index
    %c0_13 = arith.constant 0 : index
    %38 = vector.load %arg3[%c0_11, %37, %c0_12, %c0_13] : memref<1x8x2x32xf32, #tpu.memory_space<vmem>>, vector<1x1x2x32xf32>
    %39 = vector.shape_cast %38 : vector<1x1x2x32xf32> to vector<2x32xf32>
    %40 = vector.shape_cast %36 : vector<2x32xf32> to vector<1x1x2x32xf32>
    tpu.vector_store %arg3[%c0_11, %37, %c0_12, %c0_13], %40 {strides = array<i32>} : memref<1x8x2x32xf32, #tpu.memory_space<vmem>>, vector<1x1x2x32xf32>,
    %c1_i32 = arith.constant 1 : i32
    %c0_i32_14 = arith.constant 0 : i32
    %41 = arith.cmpi eq, %arg0, %c0_i32_14 : i32
    %c7_i32_15 = arith.constant 7 : i32
    %42 = arith.subi %c7_i32_15, %c1_i32 : i32
    %43 = arith.select %41, %c1_i32, %42 : i32
    %c0_16 = arith.constant 0 : index
    %44 = arith.index_cast %43 : i32 to index
    %c0_17 = arith.constant 0 : index
    %c0_18 = arith.constant 0 : index
    %45 = vector.load %arg1[%c0_16, %44, %c0_17, %c0_18] : memref<1x8x2x128xf32, #tpu.memory_space<vmem>>, vector<1x1x2x128xf32>
    %46 = vector.shape_cast %45 : vector<1x1x2x128xf32> to vector<2x128xf32>
    %cst_19 = arith.constant dense<0.000000e+00> : vector<2x128xf32>
    %47 = tpu.matmul %36, %1, %cst_19 {dimension_numbers = #tpu.dot_dimension_numbers<[1], [0], [0], [1], [0, 0, 1, 1], [], []>} : vector<2x32xf32>, vector<32x128xf32>, vector<2x128xf32> -> vector<2x128xf32>
    %48 = arith.addf %46, %47 : vector<2x128xf32>
    %49 = vector.extract_strided_slice %48 {offsets = [0, 0], sizes = [2, 32], strides = [1, 1]} : vector<2x128xf32> to vector<2x32xf32>
    %50 = arith.negf %49 : vector<2x32xf32>
    %51 = math.exp %50 : vector<2x32xf32>
    %cst_20 = arith.constant 1.000000e+00 : f32
    %52 = vector.broadcast %cst_20 : f32 to vector<2x32xf32>
    %53 = arith.addf %52, %51 : vector<2x32xf32>
    %54 = arith.divf %52, %53 : vector<2x32xf32>
    %55 = vector.extract_strided_slice %48 {offsets = [0, 32], sizes = [2, 32], strides = [1, 1]} : vector<2x128xf32> to vector<2x32xf32>
    %56 = arith.negf %55 : vector<2x32xf32>
    %57 = math.exp %56 : vector<2x32xf32>
    %cst_21 = arith.constant 1.000000e+00 : f32
    %58 = vector.broadcast %cst_21 : f32 to vector<2x32xf32>
    %59 = arith.addf %58, %57 : vector<2x32xf32>
    %60 = arith.divf %58, %59 : vector<2x32xf32>
    %61 = vector.extract_strided_slice %48 {offsets = [0, 64], sizes = [2, 32], strides = [1, 1]} : vector<2x128xf32> to vector<2x32xf32>
    %62 = math.tanh %61 : vector<2x32xf32>
    %63 = vector.extract_strided_slice %48 {offsets = [0, 96], sizes = [2, 32], strides = [1, 1]} : vector<2x128xf32> to vector<2x32xf32>
    %64 = arith.negf %63 : vector<2x32xf32>
    %65 = math.exp %64 : vector<2x32xf32>
    %cst_22 = arith.constant 1.000000e+00 : f32
    %66 = vector.broadcast %cst_22 : f32 to vector<2x32xf32>
    %67 = arith.addf %66, %65 : vector<2x32xf32>
    %68 = arith.divf %66, %67 : vector<2x32xf32>
    %69 = arith.mulf %60, %34 : vector<2x32xf32>
    %70 = arith.mulf %54, %62 : vector<2x32xf32>
    %71 = arith.addf %69, %70 : vector<2x32xf32>
    %72 = math.tanh %71 : vector<2x32xf32>
    %73 = arith.mulf %68, %72 : vector<2x32xf32>
    %c0_23 = arith.constant 0 : index
    %74 = arith.index_cast %43 : i32 to index
    %c0_24 = arith.constant 0 : index
    %c0_25 = arith.constant 0 : index
    %75 = vector.load %arg3[%c0_23, %74, %c0_24, %c0_25] : memref<1x8x2x32xf32, #tpu.memory_space<vmem>>, vector<1x1x2x32xf32>
    %76 = vector.shape_cast %75 : vector<1x1x2x32xf32> to vector<2x32xf32>
    %77 = vector.shape_cast %73 : vector<2x32xf32> to vector<1x1x2x32xf32>
    tpu.vector_store %arg3[%c0_23, %74, %c0_24, %c0_25], %77 {strides = array<i32>} : memref<1x8x2x32xf32, #tpu.memory_space<vmem>>, vector<1x1x2x32xf32>,
    %c2_i32 = arith.constant 2 : i32
    %c0_i32_26 = arith.constant 0 : i32
    %78 = arith.cmpi eq, %arg0, %c0_i32_26 : i32
    %c7_i32_27 = arith.constant 7 : i32
    %79 = arith.subi %c7_i32_27, %c2_i32 : i32
    %80 = arith.select %78, %c2_i32, %79 : i32
    %c0_28 = arith.constant 0 : index
    %81 = arith.index_cast %80 : i32 to index
    %c0_29 = arith.constant 0 : index
    %c0_30 = arith.constant 0 : index
    %82 = vector.load %arg1[%c0_28, %81, %c0_29, %c0_30] : memref<1x8x2x128xf32, #tpu.memory_space<vmem>>, vector<1x1x2x128xf32>
    %83 = vector.shape_cast %82 : vector<1x1x2x128xf32> to vector<2x128xf32>
    %cst_31 = arith.constant dense<0.000000e+00> : vector<2x128xf32>
    %84 = tpu.matmul %73, %1, %cst_31 {dimension_numbers = #tpu.dot_dimension_numbers<[1], [0], [0], [1], [0, 0, 1, 1], [], []>} : vector<2x32xf32>, vector<32x128xf32>, vector<2x128xf32> -> vector<2x128xf32>
    %85 = arith.addf %83, %84 : vector<2x128xf32>
    %86 = vector.extract_strided_slice %85 {offsets = [0, 0], sizes = [2, 32], strides = [1, 1]} : vector<2x128xf32> to vector<2x32xf32>
    %87 = arith.negf %86 : vector<2x32xf32>
    %88 = math.exp %87 : vector<2x32xf32>
    %cst_32 = arith.constant 1.000000e+00 : f32
    %89 = vector.broadcast %cst_32 : f32 to vector<2x32xf32>
    %90 = arith.addf %89, %88 : vector<2x32xf32>
    %91 = arith.divf %89, %90 : vector<2x32xf32>
    %92 = vector.extract_strided_slice %85 {offsets = [0, 32], sizes = [2, 32], strides = [1, 1]} : vector<2x128xf32> to vector<2x32xf32>
    %93 = arith.negf %92 : vector<2x32xf32>
    %94 = math.exp %93 : vector<2x32xf32>
    %cst_33 = arith.constant 1.000000e+00 : f32
    %95 = vector.broadcast %cst_33 : f32 to vector<2x32xf32>
    %96 = arith.addf %95, %94 : vector<2x32xf32>
    %97 = arith.divf %95, %96 : vector<2x32xf32>
    %98 = vector.extract_strided_slice %85 {offsets = [0, 64], sizes = [2, 32], strides = [1, 1]} : vector<2x128xf32> to vector<2x32xf32>
    %99 = math.tanh %98 : vector<2x32xf32>
    %100 = vector.extract_strided_slice %85 {offsets = [0, 96], sizes = [2, 32], strides = [1, 1]} : vector<2x128xf32> to vector<2x32xf32>
    %101 = arith.negf %100 : vector<2x32xf32>
    %102 = math.exp %101 : vector<2x32xf32>
    %cst_34 = arith.constant 1.000000e+00 : f32
    %103 = vector.broadcast %cst_34 : f32 to vector<2x32xf32>
    %104 = arith.addf %103, %102 : vector<2x32xf32>
    %105 = arith.divf %103, %104 : vector<2x32xf32>
    %106 = arith.mulf %97, %71 : vector<2x32xf32>
    %107 = arith.mulf %91, %99 : vector<2x32xf32>
    %108 = arith.addf %106, %107 : vector<2x32xf32>
    %109 = math.tanh %108 : vector<2x32xf32>
    %110 = arith.mulf %105, %109 : vector<2x32xf32>
    %c0_35 = arith.constant 0 : index
    %111 = arith.index_cast %80 : i32 to index
    %c0_36 = arith.constant 0 : index
    %c0_37 = arith.constant 0 : index
    %112 = vector.load %arg3[%c0_35, %111, %c0_36, %c0_37] : memref<1x8x2x32xf32, #tpu.memory_space<vmem>>, vector<1x1x2x32xf32>
    %113 = vector.shape_cast %112 : vector<1x1x2x32xf32> to vector<2x32xf32>
    %114 = vector.shape_cast %110 : vector<2x32xf32> to vector<1x1x2x32xf32>
    tpu.vector_store %arg3[%c0_35, %111, %c0_36, %c0_37], %114 {strides = array<i32>} : memref<1x8x2x32xf32, #tpu.memory_space<vmem>>, vector<1x1x2x32xf32>,
    %c3_i32 = arith.constant 3 : i32
    %c0_i32_38 = arith.constant 0 : i32
    %115 = arith.cmpi eq, %arg0, %c0_i32_38 : i32
    %c7_i32_39 = arith.constant 7 : i32
    %116 = arith.subi %c7_i32_39, %c3_i32 : i32
    %117 = arith.select %115, %c3_i32, %116 : i32
    %c0_40 = arith.constant 0 : index
    %118 = arith.index_cast %117 : i32 to index
    %c0_41 = arith.constant 0 : index
    %c0_42 = arith.constant 0 : index
    %119 = vector.load %arg1[%c0_40, %118, %c0_41, %c0_42] : memref<1x8x2x128xf32, #tpu.memory_space<vmem>>, vector<1x1x2x128xf32>
    %120 = vector.shape_cast %119 : vector<1x1x2x128xf32> to vector<2x128xf32>
    %cst_43 = arith.constant dense<0.000000e+00> : vector<2x128xf32>
    %121 = tpu.matmul %110, %1, %cst_43 {dimension_numbers = #tpu.dot_dimension_numbers<[1], [0], [0], [1], [0, 0, 1, 1], [], []>} : vector<2x32xf32>, vector<32x128xf32>, vector<2x128xf32> -> vector<2x128xf32>
    %122 = arith.addf %120, %121 : vector<2x128xf32>
    %123 = vector.extract_strided_slice %122 {offsets = [0, 0], sizes = [2, 32], strides = [1, 1]} : vector<2x128xf32> to vector<2x32xf32>
    %124 = arith.negf %123 : vector<2x32xf32>
    %125 = math.exp %124 : vector<2x32xf32>
    %cst_44 = arith.constant 1.000000e+00 : f32
    %126 = vector.broadcast %cst_44 : f32 to vector<2x32xf32>
    %127 = arith.addf %126, %125 : vector<2x32xf32>
    %128 = arith.divf %126, %127 : vector<2x32xf32>
    %129 = vector.extract_strided_slice %122 {offsets = [0, 32], sizes = [2, 32], strides = [1, 1]} : vector<2x128xf32> to vector<2x32xf32>
    %130 = arith.negf %129 : vector<2x32xf32>
    %131 = math.exp %130 : vector<2x32xf32>
    %cst_45 = arith.constant 1.000000e+00 : f32
    %132 = vector.broadcast %cst_45 : f32 to vector<2x32xf32>
    %133 = arith.addf %132, %131 : vector<2x32xf32>
    %134 = arith.divf %132, %133 : vector<2x32xf32>
    %135 = vector.extract_strided_slice %122 {offsets = [0, 64], sizes = [2, 32], strides = [1, 1]} : vector<2x128xf32> to vector<2x32xf32>
    %136 = math.tanh %135 : vector<2x32xf32>
    %137 = vector.extract_strided_slice %122 {offsets = [0, 96], sizes = [2, 32], strides = [1, 1]} : vector<2x128xf32> to vector<2x32xf32>
    %138 = arith.negf %137 : vector<2x32xf32>
    %139 = math.exp %138 : vector<2x32xf32>
    %cst_46 = arith.constant 1.000000e+00 : f32
    %140 = vector.broadcast %cst_46 : f32 to vector<2x32xf32>
    %141 = arith.addf %140, %139 : vector<2x32xf32>
    %142 = arith.divf %140, %141 : vector<2x32xf32>
    %143 = arith.mulf %134, %108 : vector<2x32xf32>
    %144 = arith.mulf %128, %136 : vector<2x32xf32>
    %145 = arith.addf %143, %144 : vector<2x32xf32>
    %146 = math.tanh %145 : vector<2x32xf32>
    %147 = arith.mulf %142, %146 : vector<2x32xf32>
    %c0_47 = arith.constant 0 : index
    %148 = arith.index_cast %117 : i32 to index
    %c0_48 = arith.constant 0 : index
    %c0_49 = arith.constant 0 : index
    %149 = vector.load %arg3[%c0_47, %148, %c0_48, %c0_49] : memref<1x8x2x32xf32, #tpu.memory_space<vmem>>, vector<1x1x2x32xf32>
    %150 = vector.shape_cast %149 : vector<1x1x2x32xf32> to vector<2x32xf32>
    %151 = vector.shape_cast %147 : vector<2x32xf32> to vector<1x1x2x32xf32>
    tpu.vector_store %arg3[%c0_47, %148, %c0_48, %c0_49], %151 {strides = array<i32>} : memref<1x8x2x32xf32, #tpu.memory_space<vmem>>, vector<1x1x2x32xf32>,
    %c4_i32 = arith.constant 4 : i32
    %c0_i32_50 = arith.constant 0 : i32
    %152 = arith.cmpi eq, %arg0, %c0_i32_50 : i32
    %c7_i32_51 = arith.constant 7 : i32
    %153 = arith.subi %c7_i32_51, %c4_i32 : i32
    %154 = arith.select %152, %c4_i32, %153 : i32
    %c0_52 = arith.constant 0 : index
    %155 = arith.index_cast %154 : i32 to index
    %c0_53 = arith.constant 0 : index
    %c0_54 = arith.constant 0 : index
    %156 = vector.load %arg1[%c0_52, %155, %c0_53, %c0_54] : memref<1x8x2x128xf32, #tpu.memory_space<vmem>>, vector<1x1x2x128xf32>
    %157 = vector.shape_cast %156 : vector<1x1x2x128xf32> to vector<2x128xf32>
    %cst_55 = arith.constant dense<0.000000e+00> : vector<2x128xf32>
    %158 = tpu.matmul %147, %1, %cst_55 {dimension_numbers = #tpu.dot_dimension_numbers<[1], [0], [0], [1], [0, 0, 1, 1], [], []>} : vector<2x32xf32>, vector<32x128xf32>, vector<2x128xf32> -> vector<2x128xf32>
    %159 = arith.addf %157, %158 : vector<2x128xf32>
    %160 = vector.extract_strided_slice %159 {offsets = [0, 0], sizes = [2, 32], strides = [1, 1]} : vector<2x128xf32> to vector<2x32xf32>
    %161 = arith.negf %160 : vector<2x32xf32>
    %162 = math.exp %161 : vector<2x32xf32>
    %cst_56 = arith.constant 1.000000e+00 : f32
    %163 = vector.broadcast %cst_56 : f32 to vector<2x32xf32>
    %164 = arith.addf %163, %162 : vector<2x32xf32>
    %165 = arith.divf %163, %164 : vector<2x32xf32>
    %166 = vector.extract_strided_slice %159 {offsets = [0, 32], sizes = [2, 32], strides = [1, 1]} : vector<2x128xf32> to vector<2x32xf32>
    %167 = arith.negf %166 : vector<2x32xf32>
    %168 = math.exp %167 : vector<2x32xf32>
    %cst_57 = arith.constant 1.000000e+00 : f32
    %169 = vector.broadcast %cst_57 : f32 to vector<2x32xf32>
    %170 = arith.addf %169, %168 : vector<2x32xf32>
    %171 = arith.divf %169, %170 : vector<2x32xf32>
    %172 = vector.extract_strided_slice %159 {offsets = [0, 64], sizes = [2, 32], strides = [1, 1]} : vector<2x128xf32> to vector<2x32xf32>
    %173 = math.tanh %172 : vector<2x32xf32>
    %174 = vector.extract_strided_slice %159 {offsets = [0, 96], sizes = [2, 32], strides = [1, 1]} : vector<2x128xf32> to vector<2x32xf32>
    %175 = arith.negf %174 : vector<2x32xf32>
    %176 = math.exp %175 : vector<2x32xf32>
    %cst_58 = arith.constant 1.000000e+00 : f32
    %177 = vector.broadcast %cst_58 : f32 to vector<2x32xf32>
    %178 = arith.addf %177, %176 : vector<2x32xf32>
    %179 = arith.divf %177, %178 : vector<2x32xf32>
    %180 = arith.mulf %171, %145 : vector<2x32xf32>
    %181 = arith.mulf %165, %173 : vector<2x32xf32>
    %182 = arith.addf %180, %181 : vector<2x32xf32>
    %183 = math.tanh %182 : vector<2x32xf32>
    %184 = arith.mulf %179, %183 : vector<2x32xf32>
    %c0_59 = arith.constant 0 : index
    %185 = arith.index_cast %154 : i32 to index
    %c0_60 = arith.constant 0 : index
    %c0_61 = arith.constant 0 : index
    %186 = vector.load %arg3[%c0_59, %185, %c0_60, %c0_61] : memref<1x8x2x32xf32, #tpu.memory_space<vmem>>, vector<1x1x2x32xf32>
    %187 = vector.shape_cast %186 : vector<1x1x2x32xf32> to vector<2x32xf32>
    %188 = vector.shape_cast %184 : vector<2x32xf32> to vector<1x1x2x32xf32>
    tpu.vector_store %arg3[%c0_59, %185, %c0_60, %c0_61], %188 {strides = array<i32>} : memref<1x8x2x32xf32, #tpu.memory_space<vmem>>, vector<1x1x2x32xf32>,
    %c5_i32 = arith.constant 5 : i32
    %c0_i32_62 = arith.constant 0 : i32
    %189 = arith.cmpi eq, %arg0, %c0_i32_62 : i32
    %c7_i32_63 = arith.constant 7 : i32
    %190 = arith.subi %c7_i32_63, %c5_i32 : i32
    %191 = arith.select %189, %c5_i32, %190 : i32
    %c0_64 = arith.constant 0 : index
    %192 = arith.index_cast %191 : i32 to index
    %c0_65 = arith.constant 0 : index
    %c0_66 = arith.constant 0 : index
    %193 = vector.load %arg1[%c0_64, %192, %c0_65, %c0_66] : memref<1x8x2x128xf32, #tpu.memory_space<vmem>>, vector<1x1x2x128xf32>
    %194 = vector.shape_cast %193 : vector<1x1x2x128xf32> to vector<2x128xf32>
    %cst_67 = arith.constant dense<0.000000e+00> : vector<2x128xf32>
    %195 = tpu.matmul %184, %1, %cst_67 {dimension_numbers = #tpu.dot_dimension_numbers<[1], [0], [0], [1], [0, 0, 1, 1], [], []>} : vector<2x32xf32>, vector<32x128xf32>, vector<2x128xf32> -> vector<2x128xf32>
    %196 = arith.addf %194, %195 : vector<2x128xf32>
    %197 = vector.extract_strided_slice %196 {offsets = [0, 0], sizes = [2, 32], strides = [1, 1]} : vector<2x128xf32> to vector<2x32xf32>
    %198 = arith.negf %197 : vector<2x32xf32>
    %199 = math.exp %198 : vector<2x32xf32>
    %cst_68 = arith.constant 1.000000e+00 : f32
    %200 = vector.broadcast %cst_68 : f32 to vector<2x32xf32>
    %201 = arith.addf %200, %199 : vector<2x32xf32>
    %202 = arith.divf %200, %201 : vector<2x32xf32>
    %203 = vector.extract_strided_slice %196 {offsets = [0, 32], sizes = [2, 32], strides = [1, 1]} : vector<2x128xf32> to vector<2x32xf32>
    %204 = arith.negf %203 : vector<2x32xf32>
    %205 = math.exp %204 : vector<2x32xf32>
    %cst_69 = arith.constant 1.000000e+00 : f32
    %206 = vector.broadcast %cst_69 : f32 to vector<2x32xf32>
    %207 = arith.addf %206, %205 : vector<2x32xf32>
    %208 = arith.divf %206, %207 : vector<2x32xf32>
    %209 = vector.extract_strided_slice %196 {offsets = [0, 64], sizes = [2, 32], strides = [1, 1]} : vector<2x128xf32> to vector<2x32xf32>
    %210 = math.tanh %209 : vector<2x32xf32>
    %211 = vector.extract_strided_slice %196 {offsets = [0, 96], sizes = [2, 32], strides = [1, 1]} : vector<2x128xf32> to vector<2x32xf32>
    %212 = arith.negf %211 : vector<2x32xf32>
    %213 = math.exp %212 : vector<2x32xf32>
    %cst_70 = arith.constant 1.000000e+00 : f32
    %214 = vector.broadcast %cst_70 : f32 to vector<2x32xf32>
    %215 = arith.addf %214, %213 : vector<2x32xf32>
    %216 = arith.divf %214, %215 : vector<2x32xf32>
    %217 = arith.mulf %208, %182 : vector<2x32xf32>
    %218 = arith.mulf %202, %210 : vector<2x32xf32>
    %219 = arith.addf %217, %218 : vector<2x32xf32>
    %220 = math.tanh %219 : vector<2x32xf32>
    %221 = arith.mulf %216, %220 : vector<2x32xf32>
    %c0_71 = arith.constant 0 : index
    %222 = arith.index_cast %191 : i32 to index
    %c0_72 = arith.constant 0 : index
    %c0_73 = arith.constant 0 : index
    %223 = vector.load %arg3[%c0_71, %222, %c0_72, %c0_73] : memref<1x8x2x32xf32, #tpu.memory_space<vmem>>, vector<1x1x2x32xf32>
    %224 = vector.shape_cast %223 : vector<1x1x2x32xf32> to vector<2x32xf32>
    %225 = vector.shape_cast %221 : vector<2x32xf32> to vector<1x1x2x32xf32>
    tpu.vector_store %arg3[%c0_71, %222, %c0_72, %c0_73], %225 {strides = array<i32>} : memref<1x8x2x32xf32, #tpu.memory_space<vmem>>, vector<1x1x2x32xf32>,
    %c6_i32 = arith.constant 6 : i32
    %c0_i32_74 = arith.constant 0 : i32
    %226 = arith.cmpi eq, %arg0, %c0_i32_74 : i32
    %c7_i32_75 = arith.constant 7 : i32
    %227 = arith.subi %c7_i32_75, %c6_i32 : i32
    %228 = arith.select %226, %c6_i32, %227 : i32
    %c0_76 = arith.constant 0 : index
    %229 = arith.index_cast %228 : i32 to index
    %c0_77 = arith.constant 0 : index
    %c0_78 = arith.constant 0 : index
    %230 = vector.load %arg1[%c0_76, %229, %c0_77, %c0_78] : memref<1x8x2x128xf32, #tpu.memory_space<vmem>>, vector<1x1x2x128xf32>
    %231 = vector.shape_cast %230 : vector<1x1x2x128xf32> to vector<2x128xf32>
    %cst_79 = arith.constant dense<0.000000e+00> : vector<2x128xf32>
    %232 = tpu.matmul %221, %1, %cst_79 {dimension_numbers = #tpu.dot_dimension_numbers<[1], [0], [0], [1], [0, 0, 1, 1], [], []>} : vector<2x32xf32>, vector<32x128xf32>, vector<2x128xf32> -> vector<2x128xf32>
    %233 = arith.addf %231, %232 : vector<2x128xf32>
    %234 = vector.extract_strided_slice %233 {offsets = [0, 0], sizes = [2, 32], strides = [1, 1]} : vector<2x128xf32> to vector<2x32xf32>
    %235 = arith.negf %234 : vector<2x32xf32>
    %236 = math.exp %235 : vector<2x32xf32>
    %cst_80 = arith.constant 1.000000e+00 : f32
    %237 = vector.broadcast %cst_80 : f32 to vector<2x32xf32>
    %238 = arith.addf %237, %236 : vector<2x32xf32>
    %239 = arith.divf %237, %238 : vector<2x32xf32>
    %240 = vector.extract_strided_slice %233 {offsets = [0, 32], sizes = [2, 32], strides = [1, 1]} : vector<2x128xf32> to vector<2x32xf32>
    %241 = arith.negf %240 : vector<2x32xf32>
    %242 = math.exp %241 : vector<2x32xf32>
    %cst_81 = arith.constant 1.000000e+00 : f32
    %243 = vector.broadcast %cst_81 : f32 to vector<2x32xf32>
    %244 = arith.addf %243, %242 : vector<2x32xf32>
    %245 = arith.divf %243, %244 : vector<2x32xf32>
    %246 = vector.extract_strided_slice %233 {offsets = [0, 64], sizes = [2, 32], strides = [1, 1]} : vector<2x128xf32> to vector<2x32xf32>
    %247 = math.tanh %246 : vector<2x32xf32>
    %248 = vector.extract_strided_slice %233 {offsets = [0, 96], sizes = [2, 32], strides = [1, 1]} : vector<2x128xf32> to vector<2x32xf32>
    %249 = arith.negf %248 : vector<2x32xf32>
    %250 = math.exp %249 : vector<2x32xf32>
    %cst_82 = arith.constant 1.000000e+00 : f32
    %251 = vector.broadcast %cst_82 : f32 to vector<2x32xf32>
    %252 = arith.addf %251, %250 : vector<2x32xf32>
    %253 = arith.divf %251, %252 : vector<2x32xf32>
    %254 = arith.mulf %245, %219 : vector<2x32xf32>
    %255 = arith.mulf %239, %247 : vector<2x32xf32>
    %256 = arith.addf %254, %255 : vector<2x32xf32>
    %257 = math.tanh %256 : vector<2x32xf32>
    %258 = arith.mulf %253, %257 : vector<2x32xf32>
    %c0_83 = arith.constant 0 : index
    %259 = arith.index_cast %228 : i32 to index
    %c0_84 = arith.constant 0 : index
    %c0_85 = arith.constant 0 : index
    %260 = vector.load %arg3[%c0_83, %259, %c0_84, %c0_85] : memref<1x8x2x32xf32, #tpu.memory_space<vmem>>, vector<1x1x2x32xf32>
    %261 = vector.shape_cast %260 : vector<1x1x2x32xf32> to vector<2x32xf32>
    %262 = vector.shape_cast %258 : vector<2x32xf32> to vector<1x1x2x32xf32>
    tpu.vector_store %arg3[%c0_83, %259, %c0_84, %c0_85], %262 {strides = array<i32>} : memref<1x8x2x32xf32, #tpu.memory_space<vmem>>, vector<1x1x2x32xf32>,
    %c7_i32_86 = arith.constant 7 : i32
    %c0_i32_87 = arith.constant 0 : i32
    %263 = arith.cmpi eq, %arg0, %c0_i32_87 : i32
    %c7_i32_88 = arith.constant 7 : i32
    %264 = arith.subi %c7_i32_88, %c7_i32_86 : i32
    %265 = arith.select %263, %c7_i32_86, %264 : i32
    %c0_89 = arith.constant 0 : index
    %266 = arith.index_cast %265 : i32 to index
    %c0_90 = arith.constant 0 : index
    %c0_91 = arith.constant 0 : index
    %267 = vector.load %arg1[%c0_89, %266, %c0_90, %c0_91] : memref<1x8x2x128xf32, #tpu.memory_space<vmem>>, vector<1x1x2x128xf32>
    %268 = vector.shape_cast %267 : vector<1x1x2x128xf32> to vector<2x128xf32>
    %cst_92 = arith.constant dense<0.000000e+00> : vector<2x128xf32>
    %269 = tpu.matmul %258, %1, %cst_92 {dimension_numbers = #tpu.dot_dimension_numbers<[1], [0], [0], [1], [0, 0, 1, 1], [], []>} : vector<2x32xf32>, vector<32x128xf32>, vector<2x128xf32> -> vector<2x128xf32>
    %270 = arith.addf %268, %269 : vector<2x128xf32>
    %271 = vector.extract_strided_slice %270 {offsets = [0, 0], sizes = [2, 32], strides = [1, 1]} : vector<2x128xf32> to vector<2x32xf32>
    %272 = arith.negf %271 : vector<2x32xf32>
    %273 = math.exp %272 : vector<2x32xf32>
    %cst_93 = arith.constant 1.000000e+00 : f32
    %274 = vector.broadcast %cst_93 : f32 to vector<2x32xf32>
    %275 = arith.addf %274, %273 : vector<2x32xf32>
    %276 = arith.divf %274, %275 : vector<2x32xf32>
    %277 = vector.extract_strided_slice %270 {offsets = [0, 32], sizes = [2, 32], strides = [1, 1]} : vector<2x128xf32> to vector<2x32xf32>
    %278 = arith.negf %277 : vector<2x32xf32>
    %279 = math.exp %278 : vector<2x32xf32>
    %cst_94 = arith.constant 1.000000e+00 : f32
    %280 = vector.broadcast %cst_94 : f32 to vector<2x32xf32>
    %281 = arith.addf %280, %279 : vector<2x32xf32>
    %282 = arith.divf %280, %281 : vector<2x32xf32>
    %283 = vector.extract_strided_slice %270 {offsets = [0, 64], sizes = [2, 32], strides = [1, 1]} : vector<2x128xf32> to vector<2x32xf32>
    %284 = math.tanh %283 : vector<2x32xf32>
    %285 = vector.extract_strided_slice %270 {offsets = [0, 96], sizes = [2, 32], strides = [1, 1]} : vector<2x128xf32> to vector<2x32xf32>
    %286 = arith.negf %285 : vector<2x32xf32>
    %287 = math.exp %286 : vector<2x32xf32>
    %cst_95 = arith.constant 1.000000e+00 : f32
    %288 = vector.broadcast %cst_95 : f32 to vector<2x32xf32>
    %289 = arith.addf %288, %287 : vector<2x32xf32>
    %290 = arith.divf %288, %289 : vector<2x32xf32>
    %291 = arith.mulf %282, %256 : vector<2x32xf32>
    %292 = arith.mulf %276, %284 : vector<2x32xf32>
    %293 = arith.addf %291, %292 : vector<2x32xf32>
    %294 = math.tanh %293 : vector<2x32xf32>
    %295 = arith.mulf %290, %294 : vector<2x32xf32>
    %c0_96 = arith.constant 0 : index
    %296 = arith.index_cast %265 : i32 to index
    %c0_97 = arith.constant 0 : index
    %c0_98 = arith.constant 0 : index
    %297 = vector.load %arg3[%c0_96, %296, %c0_97, %c0_98] : memref<1x8x2x32xf32, #tpu.memory_space<vmem>>, vector<1x1x2x32xf32>
    %298 = vector.shape_cast %297 : vector<1x1x2x32xf32> to vector<2x32xf32>
    %299 = vector.shape_cast %295 : vector<2x32xf32> to vector<1x1x2x32xf32>
    tpu.vector_store %arg3[%c0_96, %296, %c0_97, %c0_98], %299 {strides = array<i32>} : memref<1x8x2x32xf32, #tpu.memory_space<vmem>>, vector<1x1x2x32xf32>,
    %c8_i32 = arith.constant 8 : i32
    %c0_99 = arith.constant 0 : index
    %c0_100 = arith.constant 0 : index
    %c0_101 = arith.constant 0 : index
    %300 = vector.load %arg4[%c0_99, %c0_100, %c0_101] : memref<1x2x32xf32, #tpu.memory_space<vmem>>, vector<1x2x32xf32>
    %301 = vector.shape_cast %300 : vector<1x2x32xf32> to vector<2x32xf32>
    %302 = vector.shape_cast %295 : vector<2x32xf32> to vector<1x2x32xf32>
    tpu.vector_store %arg4[%c0_99, %c0_100, %c0_101], %302 {strides = array<i32>} : memref<1x2x32xf32, #tpu.memory_space<vmem>>, vector<1x2x32xf32>,
    %c0_102 = arith.constant 0 : index
    %c0_103 = arith.constant 0 : index
    %c0_104 = arith.constant 0 : index
    %303 = vector.load %arg5[%c0_102, %c0_103, %c0_104] : memref<1x2x32xf32, #tpu.memory_space<vmem>>, vector<1x2x32xf32>
    %304 = vector.shape_cast %303 : vector<1x2x32xf32> to vector<2x32xf32>
    %305 = vector.shape_cast %293 : vector<2x32xf32> to vector<1x2x32xf32>
    tpu.vector_store %arg5[%c0_102, %c0_103, %c0_104], %305 {strides = array<i32>} : memref<1x2x32xf32, #tpu.memory_space<vmem>>, vector<1x2x32xf32>,
    return
  }
  func.func @transform_0(%arg0: i32) -> (i32, i32, i32, i32) {
    %c0_i32 = arith.constant 0 : i32
    %c0_i32_0 = arith.constant 0 : i32
    %c0_i32_1 = arith.constant 0 : i32
    %c0_i32_2 = arith.constant 0 : i32
    return %arg0, %c0_i32, %c0_i32_0, %c0_i32_1 : i32, i32, i32, i32
  }
  func.func @transform_1(%arg0: i32) -> (i32, i32, i32) {
    %c0_i32 = arith.constant 0 : i32
    %c0_i32_0 = arith.constant 0 : i32
    %c0_i32_1 = arith.constant 0 : i32
    return %arg0, %c0_i32, %c0_i32_0 : i32, i32, i32
  }
  func.func @transform_2(%arg0: i32) -> (i32, i32, i32, i32) {
    %c0_i32 = arith.constant 0 : i32
    %c0_i32_0 = arith.constant 0 : i32
    %c0_i32_1 = arith.constant 0 : i32
    %c0_i32_2 = arith.constant 0 : i32
    return %arg0, %c0_i32, %c0_i32_0, %c0_i32_1 : i32, i32, i32, i32
  }
  func.func @transform_3(%arg0: i32) -> (i32, i32, i32) {
    %c0_i32 = arith.constant 0 : i32
    %c0_i32_0 = arith.constant 0 : i32
    %c0_i32_1 = arith.constant 0 : i32
    return %arg0, %c0_i32, %c0_i32_0 : i32, i32, i32
  }
  func.func @transform_4(%arg0: i32) -> (i32, i32, i32) {
    %c0_i32 = arith.constant 0 : i32
    %c0_i32_0 = arith.constant 0 : i32
    %c0_i32_1 = arith.constant 0 : i32
    return %arg0, %c0_i32, %c0_i32_0 : i32, i32, i32
  }
}

</mosaic_0001>

<llo_original>
// kernel: encoder_rnn_forward.3
$region0: #{encoder_rnn_forward.3}
  #allocation0 [shape = 'u32[]', space=smem, size = 0x4, offset = 0x4, fixed_abs, tag = 'smem constant byte address 0x4 - core index']
  #allocation1 [shape = 'u32[144,128]{1,0:T(1,128)}', space=vmem, size = 0x12000, scoped, tag = 'internal scratch']
  %s0 = inlined_call_operand.vmem [shape: f32[2,8,2,128], index: 0, kind: input, shape index: {}]
  %s1 = inlined_call_operand.vmem [shape: f32[2,32,128], index: 1, kind: input, shape index: {}]
  %s2 = inlined_call_operand.vmem [shape: f32[2,8,2,32], index: 2, kind: output, shape index: {0}]
  %s3 = inlined_call_operand.vmem [shape: f32[2,2,32], index: 3, kind: output, shape index: {1}]
  %s4 = inlined_call_operand.vmem [shape: f32[2,2,32], index: 4, kind: output, shape index: {2}]
  %5 = xla_tuple %s2, %s3, %s4
  %s6 = sld [smem:[#allocation0]]
  $region57: #{encoder_rnn_forward.3} parent=0
    _
  %s8 = ssub.s32 1, %s6
  %s9 = scalar_select 0, %s8, %s6
  loop: start=0, step=1, limit=4
  $region2: #{encoder_rnn_forward.3} parent=0 // loop_pre_header
    _
  $region3: #{encoder_rnn_forward.3} parent=0 // loop_header
    %s11 = sphi 0, %s15
    %p12 = scmp.ge.s32.totalorder %s11, 4
    %s21 = sphi 0, %s23
    %s24 = sphi 0, %s21
    %s25 = sphi 0, %s24
    %s41 = sphi 0, %s25
    %s47 = sphi 0, %s49
    %s50 = sphi 0, %s47
    %s51 = sphi 0, %s50
    %s67 = sphi 0, %s51
    %s73 = sphi 0, %s75
    %s76 = sphi 0, %s73
    %s77 = sphi 0, %s76
    %s93 = sphi 0, %s77
    %s99 = sphi 0, %s101
    %s102 = sphi 0, %s99
    %s103 = sphi 0, %s102
    %s119 = sphi 0, %s103
    %s125 = sphi 0, %s127
    %s128 = sphi 0, %s125
    %s129 = sphi 0, %s128
    %s145 = sphi 0, %s129
  $region4: #{encoder_rnn_forward.3} parent=0 // loop_header_branch
    %14 = sbr.rel (%p12) target = $region8
  $region5: #{encoder_rnn_forward.3} parent=0 // loop_body
    %s16 = ssub.s32 %s11, 1
    %s17 = ssub.s32 %s11, 2
    %s18 = sadd.s32 %s11, 1
    %s19 = ssub.s32 %s11, %s18
    %p20 = scmp.eq.s32.totalorder %s19, 0
    %s22 = sadd.s32 %s21, 1
    %s23 = scalar_select %p20, %s21, %s22
    %p26 = pneg %p20
    %p27 = scmp.eq.s32.totalorder %s11, 1
    %p28 = por %p26, %p27
    %p29 = scmp.ne.s32.totalorder %s21, %s24
    %p30 = scmp.eq.s32.totalorder %s11, 0
    %p31 = por %p29, %p30
    %p32 = scmp.ne.s32.totalorder %s21, %s24
    %p33 = scmp.eq.s32.totalorder %s16, 1
    %p34 = por %p32, %p33
    %p35 = scmp.ne.s32.totalorder %s24, %s25
    %p36 = scmp.eq.s32.totalorder %s16, 0
    %p37 = por %p35, %p36
    %p38 = scmp.ne.s32.totalorder %s24, %s25
    %p39 = scmp.eq.s32.totalorder %s17, 1
    %p40 = por %p38, %p39
    %p42 = scmp.ne.s32.totalorder %s25, %s41
    %p43 = scmp.eq.s32.totalorder %s17, 0
    %p44 = por %p42, %p43
    %s45 = ssub.s32 %s11, %s18
    %p46 = scmp.eq.s32.totalorder %s45, 0
    %s48 = sadd.s32 %s47, 1
    %s49 = scalar_select %p46, %s47, %s48
    %p52 = pneg %p46
    %p53 = scmp.eq.s32.totalorder %s11, 1
    %p54 = por %p52, %p53
    %p55 = scmp.ne.s32.totalorder %s47, %s50
    %p56 = scmp.eq.s32.totalorder %s11, 0
    %p57 = por %p55, %p56
    %p58 = scmp.ne.s32.totalorder %s47, %s50
    %p59 = scmp.eq.s32.totalorder %s16, 1
    %p60 = por %p58, %p59
    %p61 = scmp.ne.s32.totalorder %s50, %s51
    %p62 = scmp.eq.s32.totalorder %s16, 0
    %p63 = por %p61, %p62
    %p64 = scmp.ne.s32.totalorder %s50, %s51
    %p65 = scmp.eq.s32.totalorder %s17, 1
    %p66 = por %p64, %p65
    %p68 = scmp.ne.s32.totalorder %s51, %s67
    %p69 = scmp.eq.s32.totalorder %s17, 0
    %p70 = por %p68, %p69
    %s71 = ssub.s32 %s11, %s18
    %p72 = scmp.eq.s32.totalorder %s71, 0
    %s74 = sadd.s32 %s73, 1
    %s75 = scalar_select %p72, %s73, %s74
    %p78 = pneg %p72
    %p79 = scmp.eq.s32.totalorder %s11, 1
    %p80 = por %p78, %p79
    %p81 = scmp.ne.s32.totalorder %s73, %s76
    %p82 = scmp.eq.s32.totalorder %s11, 0
    %p83 = por %p81, %p82
    %p84 = scmp.ne.s32.totalorder %s73, %s76
    %p85 = scmp.eq.s32.totalorder %s16, 1
    %p86 = por %p84, %p85
    %p87 = scmp.ne.s32.totalorder %s76, %s77
    %p88 = scmp.eq.s32.totalorder %s16, 0
    %p89 = por %p87, %p88
    %p90 = scmp.ne.s32.totalorder %s76, %s77
    %p91 = scmp.eq.s32.totalorder %s17, 1
    %p92 = por %p90, %p91
    %p94 = scmp.ne.s32.totalorder %s77, %s93
    %p95 = scmp.eq.s32.totalorder %s17, 0
    %p96 = por %p94, %p95
    %s97 = ssub.s32 %s11, %s18
    %p98 = scmp.eq.s32.totalorder %s97, 0
    %s100 = sadd.s32 %s99, 1
    %s101 = scalar_select %p98, %s99, %s100
    %p104 = pneg %p98
    %p105 = scmp.eq.s32.totalorder %s11, 1
    %p106 = por %p104, %p105
    %p107 = scmp.ne.s32.totalorder %s99, %s102
    %p108 = scmp.eq.s32.totalorder %s11, 0
    %p109 = por %p107, %p108
    %p110 = scmp.ne.s32.totalorder %s99, %s102
    %p111 = scmp.eq.s32.totalorder %s16, 1
    %p112 = por %p110, %p111
    %p113 = scmp.ne.s32.totalorder %s102, %s103
    %p114 = scmp.eq.s32.totalorder %s16, 0
    %p115 = por %p113, %p114
    %p116 = scmp.ne.s32.totalorder %s102, %s103
    %p117 = scmp.eq.s32.totalorder %s17, 1
    %p118 = por %p116, %p117
    %p120 = scmp.ne.s32.totalorder %s103, %s119
    %p121 = scmp.eq.s32.totalorder %s17, 0
    %p122 = por %p120, %p121
    %s123 = ssub.s32 %s11, %s18
    %p124 = scmp.eq.s32.totalorder %s123, 0
    %s126 = sadd.s32 %s125, 1
    %s127 = scalar_select %p124, %s125, %s126
    %p130 = pneg %p124
    %p131 = scmp.eq.s32.totalorder %s11, 1
    %p132 = por %p130, %p131
    %p133 = scmp.ne.s32.totalorder %s125, %s128
    %p134 = scmp.eq.s32.totalorder %s11, 0
    %p135 = por %p133, %p134
    %p136 = scmp.ne.s32.totalorder %s125, %s128
    %p137 = scmp.eq.s32.totalorder %s16, 1
    %p138 = por %p136, %p137
    %p139 = scmp.ne.s32.totalorder %s128, %s129
    %p140 = scmp.eq.s32.totalorder %s16, 0
    %p141 = por %p139, %p140
    %p142 = scmp.ne.s32.totalorder %s128, %s129
    %p143 = scmp.eq.s32.totalorder %s17, 1
    %p144 = por %p142, %p143
    %p146 = scmp.ne.s32.totalorder %s129, %s145
    %p147 = scmp.eq.s32.totalorder %s17, 0
    %p148 = por %p146, %p147
    %p149 = scmp.le.s32.totalorder 1, %s11
    %p150 = scmp.lt.s32.totalorder %s11, 3
    %p151 = pnand %p149, %p150
    %p152 = pneg %p151
    // Predicated region
    $region9: #{encoder_rnn_forward.3} parent=5 // pred_check
      _
    $region10: #{encoder_rnn_forward.3} parent=5 // pred_check_branch
      %154 = sbr.rel (%p151) target = $region12
    $region11: #{encoder_rnn_forward.3} parent=5 // pred_region
      %s155 = ssub.s32 %s11, 1
    $region12: #{encoder_rnn_forward.3} parent=5 // pred_fallthru
      _
    %p156 = scmp.lt.s32.totalorder %s11, 2
    // Predicated region
    $region13: #{encoder_rnn_forward.3} parent=5 // pred_check
      %p157 = pneg %p156
    $region14: #{encoder_rnn_forward.3} parent=5 // pred_check_branch
      %159 = sbr.rel (%p157) target = $region16
    $region15: #{encoder_rnn_forward.3} parent=5 // pred_region
      // Predicated region
      $region17: #{encoder_rnn_forward.3} parent=15 // pred_check
        %p160 = pneg %p31
      $region18: #{encoder_rnn_forward.3} parent=15 // pred_check_branch
        %162 = sbr.rel (%p160) target = $region20
      $region19: #{encoder_rnn_forward.3} parent=15 // pred_region
        %p163 = scmp.lt.s32.totalorder %s11, 1
        %s164 = scalar_select %p163, %s11, 1
        %s165 = smul.addr %s164, 8
        %s166 = smul.addr %s165, 2
        %s167 = scalar_lea.vmem %s0, %s166
      $region20: #{encoder_rnn_forward.3} parent=15 // pred_fallthru
        _
      // Predicated region
      $region21: #{encoder_rnn_forward.3} parent=15 // pred_check
        %p168 = pneg %p57
      $region22: #{encoder_rnn_forward.3} parent=15 // pred_check_branch
        %170 = sbr.rel (%p168) target = $region24
      $region23: #{encoder_rnn_forward.3} parent=15 // pred_region
        %p171 = scmp.lt.s32.totalorder %s11, 1
        %s172 = scalar_select %p171, %s11, 1
        %s173 = smul.addr %s172, 4
        %s174 = smul.addr %s173, 8
        %s175 = scalar_lea.vmem %s1, %s174
      $region24: #{encoder_rnn_forward.3} parent=15 // pred_fallthru
        _
    $region16: #{encoder_rnn_forward.3} parent=5 // pred_fallthru
      _
    %p176 = scmp.le.s32.totalorder 1, %s11
    %p177 = scmp.lt.s32.totalorder %s11, 3
    %p178 = pnand %p176, %p177
    %p179 = pneg %p178
    // Predicated region
    $region25: #{encoder_rnn_forward.3} parent=5 // pred_check
      _
    $region26: #{encoder_rnn_forward.3} parent=5 // pred_check_branch
      %181 = sbr.rel (%p178) target = $region28
    $region27: #{encoder_rnn_forward.3} parent=5 // pred_region
      %s182 = ssub.s32 %s11, 1
      %p183 = scmp.lt.s32.totalorder %s16, 1
      %s184 = scalar_select %p183, %s16, 1
      %s185 = smul.addr %s184, 8
      %s186 = smul.addr %s185, 2
      %s187 = scalar_lea.vmem %s0, %s186
      %p188 = pneg %p37
      %p189 = pneg %p34
      %p190 = scmp.lt.s32.totalorder %s16, 1
      %s191 = scalar_select %p190, %s16, 1
      %s192 = smul.addr %s191, 4
      %s193 = smul.addr %s192, 8
      %s194 = scalar_lea.vmem %s1, %s193
      %p195 = pneg %p63
      %p196 = pneg %p60
      %p197 = pneg %p89
      %p198 = pneg %p86
      %p199 = scmp.lt.s32.totalorder %s16, 1
      %s200 = scalar_select %p199, %s16, 1
      %s201 = smul.addr %s200, 8
      %s202 = smul.addr %s201, 2
      %s203 = scalar_lea.vmem %s2, %s202
      %p204 = pneg %p115
      %p205 = pneg %p112
      %p206 = scmp.lt.s32.totalorder %s16, 1
      %s207 = scalar_select %p206, %s16, 1
      %s208 = smul.addr %s207, 2
      %s209 = scalar_lea.vmem %s3, %s208
      %p210 = pneg %p141
      %p211 = pneg %p138
      %p212 = scmp.lt.s32.totalorder %s16, 1
      %s213 = scalar_select %p212, %s16, 1
      %s214 = smul.addr %s213, 2
      %s215 = scalar_lea.vmem %s4, %s214
      %p216 = scmp.lt.s32.totalorder %s16, 1
      %s217 = scalar_select %p216, %s16, 1
      %s218 = smul.addr %s217, 8
      %s219 = smul.addr %s218, 2
      %s220 = scalar_lea.vmem %s0, %s219
      %p221 = scmp.lt.s32.totalorder %s16, 1
      %s222 = scalar_select %p221, %s16, 1
      %s223 = smul.addr %s222, 4
      %s224 = smul.addr %s223, 8
      %s225 = scalar_lea.vmem %s1, %s224
      %p226 = scmp.lt.s32.totalorder %s16, 1
      %s227 = scalar_select %p226, %s16, 1
      %s228 = smul.addr %s227, 8
      %s229 = smul.addr %s228, 2
      %s230 = scalar_lea.vmem %s2, %s229
      %p231 = scmp.lt.s32.totalorder %s16, 1
      %s232 = scalar_select %p231, %s16, 1
      %s233 = smul.addr %s232, 2
      %s234 = scalar_lea.vmem %s3, %s233
      %p235 = scmp.lt.s32.totalorder %s16, 1
      %s236 = scalar_select %p235, %s16, 1
      %s237 = smul.addr %s236, 2
      %s238 = scalar_lea.vmem %s4, %s237
      %v239 = vld [vmem:[%s225] sm:$0xff]
      %v240 = vld [vmem:[%s225 + $0x8] sm:$0xff]
      %v241 = vld [vmem:[%s225 + $0x10] sm:$0xff]
      %v242 = vld [vmem:[%s225 + $0x18] sm:$0xff]
      %p243 = scmp.eq.s32.totalorder %s16, 0
      %s244 = scalar_select %p243, 0, 7
      %s245 = smul.u32 %s244, 2
      %s246 = scalar_lea.vmem %s220, %s245
      %v247 = vld [vmem:[%s246] sm:$0x3]
      %vm248 = vcmask 261120
      %v250 = vsel %vm248, 0.0, 0
      %252 = vmatprep.subr.mxu0 0.0
      %253 = vmatpush1.msra.mxu0 0.0
      %254 = vmatprep.subr.mxu0 0.0
      %255 = vmatpush1.msra.mxu0 0.0
      %256 = vmatprep.subr.mxu0 0.0
      %257 = vmatpush1.msra.mxu0 0.0
      %258 = vmatprep.subr.mxu0 0.0
      %259 = vmatpush1.msra.mxu0 0.0
      %260 = vmatprep.subr.mxu0 0.0
      %261 = vmatpush1.msra.mxu0 0.0
      %262 = vmatprep.subr.mxu0 0.0
      %263 = vmatpush1.msra.mxu0 0.0
      %264 = vmatprep.subr.mxu0 0.0
      %265 = vmatpush1.msra.mxu0 0.0
      %266 = vmatprep.subr.mxu0 0.0
      %267 = vmatpush1.msra.mxu0 0.0
      %268 = vmatprep.subr.mxu0 0.0
      %269 = vmatpush1.msra.mxu0 0.0
      %270 = vmatprep.subr.mxu0 0.0
      %271 = vmatpush1.msra.mxu0 0.0
      %272 = vmatprep.subr.mxu0 0.0
      %273 = vmatpush1.msra.mxu0 0.0
      %274 = vmatprep.subr.mxu0 0.0
      %275 = vmatpush1.msra.mxu0 0.0
      %276 = vmatprep.subr.mxu0 0.0
      %277 = vmatpush1.msra.mxu0 %v242
      %278 = vmatprep.subr.mxu0 0.0
      %279 = vmatpush1.msra.mxu0 %v241
      %280 = vmatprep.subr.mxu0 0.0
      %281 = vmatpush1.msra.mxu0 %v240
      %282 = vmatprep.subr.mxu0 0.0
      %283 = vmatpush1.msra.mxu0 %v239
      %284 = vmatprep.subr.mxu0 0.0
      %285 = vmatpush2.msra.mxu0 0.0
      %286 = vmatprep.subr.mxu0 0.0
      %287 = vmatpush2.msra.mxu0 0.0
      %288 = vmatprep.subr.mxu0 0.0
      %289 = vmatpush2.msra.mxu0 0.0
      %290 = vmatprep.subr.mxu0 0.0
      %291 = vmatpush2.msra.mxu0 0.0
      %292 = vmatprep.subr.mxu0 0.0
      %293 = vmatpush2.msra.mxu0 0.0
      %294 = vmatprep.subr.mxu0 0.0
      %295 = vmatpush2.msra.mxu0 0.0
      %296 = vmatprep.subr.mxu0 0.0
      %297 = vmatpush2.msra.mxu0 0.0
      %298 = vmatprep.subr.mxu0 0.0
      %299 = vmatpush2.msra.mxu0 0.0
      %300 = vmatprep.subr.mxu0 0.0
      %301 = vmatpush2.msra.mxu0 0.0
      %302 = vmatprep.subr.mxu0 0.0
      %303 = vmatpush2.msra.mxu0 0.0
      %304 = vmatprep.subr.mxu0 0.0
      %305 = vmatpush2.msra.mxu0 0.0
      %306 = vmatprep.subr.mxu0 0.0
      %307 = vmatpush2.msra.mxu0 0.0
      %308 = vmatprep.subr.mxu0 0.0
      %309 = vmatpush2.msra.mxu0 0.0
      %310 = vmatprep.subr.mxu0 0.0
      %311 = vmatpush2.msra.mxu0 0.0
      %312 = vmatprep.subr.mxu0 0.0
      %313 = vmatpush2.msra.mxu0 0.0
      %314 = vmatprep.subr.mxu0 0.0
      %315 = vmatpush2.msra.mxu0 0.0
      %316 = vmatprep.mubr.f32.mxu0 0.0
      %317 = vmatmul.mubr.f32.gmra.mxu0 %v250
      %v318 = vpop.f32.mrf.mxu0
      %v319 = vadd.f32 0.0, %v318
      %v320 = vpop.f32.mrf.mxu0
      %321 = vdwg.mxu0
      %v322 = vadd.f32 %v247, %v319
      %v323 = vxor.u32 %v322, 2147483648
      %v324 = vmul.f32 %v323, 1.442695
      %v325 = vpow.pop %v324
      %v326 = vadd.f32 %v325, 1.0
      %v327 = vrcp.pop %v326
      %v328 = vmul.f32 1.0, %v327
      %v329 = vtanh.pop %v322
      %v330 = vmul.f32 %v328, 0.0
      %332 = vrot.lane.b32.xlu0 %v329, 64
      %v333 = vpop.permute.xlu0 %332
      %v335 = vmul.f32 %v328, %v333
      %337 = vrot.lane.b32.xlu0 %v335, 32
      %v338 = vpop.permute.xlu0 %337
      %v340 = vadd.f32 %v330, %v338
      %v341 = vtanh.pop %v340
      %343 = vrot.lane.b32.xlu0 %v341, 64
      %v344 = vpop.permute.xlu0 %343
      %v346 = vmul.f32 %v328, %v344
      %348 = vrot.lane.b32.xlu0 %v346, 32
      %v349 = vpop.permute.xlu0 %348
      %s351 = scalar_lea.vmem %s230, %s245
      %vm352 = vcmask 254976
      %353 = vst.msk [vmem:[%s351] sm:$0x3] %vm352, %v349
      %s354 = scalar_select %p243, 1, 6
      %s355 = smul.u32 %s354, 2
      %s356 = scalar_lea.vmem %s220, %s355
      %v357 = vld [vmem:[%s356] sm:$0x3]
      %v358 = vsel %vm248, %v349, 0
      %360 = vmatprep.subr.mxu0 0.0
      %361 = vmatpush1.msra.mxu0 0.0
      %362 = vmatprep.subr.mxu0 0.0
      %363 = vmatpush1.msra.mxu0 0.0
      %364 = vmatprep.subr.mxu0 0.0
      %365 = vmatpush1.msra.mxu0 0.0
      %366 = vmatprep.subr.mxu0 0.0
      %367 = vmatpush1.msra.mxu0 0.0
      %368 = vmatprep.subr.mxu0 0.0
      %369 = vmatpush1.msra.mxu0 0.0
      %370 = vmatprep.subr.mxu0 0.0
      %371 = vmatpush1.msra.mxu0 0.0
      %372 = vmatprep.subr.mxu0 0.0
      %373 = vmatpush1.msra.mxu0 0.0
      %374 = vmatprep.subr.mxu0 0.0
      %375 = vmatpush1.msra.mxu0 0.0
      %376 = vmatprep.subr.mxu0 0.0
      %377 = vmatpush1.msra.mxu0 0.0
      %378 = vmatprep.subr.mxu0 0.0
      %379 = vmatpush1.msra.mxu0 0.0
      %380 = vmatprep.subr.mxu0 0.0
      %381 = vmatpush1.msra.mxu0 0.0
      %382 = vmatprep.subr.mxu0 0.0
      %383 = vmatpush1.msra.mxu0 0.0
      %384 = vmatprep.subr.mxu0 0.0
      %385 = vmatpush1.msra.mxu0 %v242
      %386 = vmatprep.subr.mxu0 0.0
      %387 = vmatpush1.msra.mxu0 %v241
      %388 = vmatprep.subr.mxu0 0.0
      %389 = vmatpush1.msra.mxu0 %v240
      %390 = vmatprep.subr.mxu0 0.0
      %391 = vmatpush1.msra.mxu0 %v239
      %392 = vmatprep.subr.mxu0 0.0
      %393 = vmatpush2.msra.mxu0 0.0
      %394 = vmatprep.subr.mxu0 0.0
      %395 = vmatpush2.msra.mxu0 0.0
      %396 = vmatprep.subr.mxu0 0.0
      %397 = vmatpush2.msra.mxu0 0.0
      %398 = vmatprep.subr.mxu0 0.0
      %399 = vmatpush2.msra.mxu0 0.0
      %400 = vmatprep.subr.mxu0 0.0
      %401 = vmatpush2.msra.mxu0 0.0
      %402 = vmatprep.subr.mxu0 0.0
      %403 = vmatpush2.msra.mxu0 0.0
      %404 = vmatprep.subr.mxu0 0.0
      %405 = vmatpush2.msra.mxu0 0.0
      %406 = vmatprep.subr.mxu0 0.0
      %407 = vmatpush2.msra.mxu0 0.0
      %408 = vmatprep.subr.mxu0 0.0
      %409 = vmatpush2.msra.mxu0 0.0
      %410 = vmatprep.subr.mxu0 0.0
      %411 = vmatpush2.msra.mxu0 0.0
      %412 = vmatprep.subr.mxu0 0.0
      %413 = vmatpush2.msra.mxu0 0.0
      %414 = vmatprep.subr.mxu0 0.0
      %415 = vmatpush2.msra.mxu0 0.0
      %416 = vmatprep.subr.mxu0 0.0
      %417 = vmatpush2.msra.mxu0 0.0
      %418 = vmatprep.subr.mxu0 0.0
      %419 = vmatpush2.msra.mxu0 0.0
      %420 = vmatprep.subr.mxu0 0.0
      %421 = vmatpush2.msra.mxu0 0.0
      %422 = vmatprep.subr.mxu0 0.0
      %423 = vmatpush2.msra.mxu0 0.0
      %424 = vmatprep.mubr.f32.mxu0 0.0
      %425 = vmatmul.mubr.f32.gmra.mxu0 %v358
      %v426 = vpop.f32.mrf.mxu0
      %v427 = vadd.f32 0.0, %v426
      %v428 = vpop.f32.mrf.mxu0
      %429 = vdwg.mxu0
      %v430 = vadd.f32 %v357, %v427
      %v431 = vxor.u32 %v430, 2147483648
      %v432 = vmul.f32 %v431, 1.442695
      %v433 = vpow.pop %v432
      %v434 = vadd.f32 %v433, 1.0
      %v435 = vrcp.pop %v434
      %v436 = vmul.f32 1.0, %v435
      %v437 = vtanh.pop %v430
      %v438 = vmul.f32 %v436, %v340
      %440 = vrot.lane.b32.xlu0 %v437, 64
      %v441 = vpop.permute.xlu0 %440
      %v443 = vmul.f32 %v436, %v441
      %445 = vrot.lane.b32.xlu0 %v443, 32
      %v446 = vpop.permute.xlu0 %445
      %v448 = vadd.f32 %v438, %v446
      %v449 = vtanh.pop %v448
      %451 = vrot.lane.b32.xlu0 %v449, 64
      %v452 = vpop.permute.xlu0 %451
      %v454 = vmul.f32 %v436, %v452
      %456 = vrot.lane.b32.xlu0 %v454, 32
      %v457 = vpop.permute.xlu0 %456
      %s459 = scalar_lea.vmem %s230, %s355
      %460 = vst.msk [vmem:[%s459] sm:$0x3] %vm352, %v457
      %s461 = scalar_select %p243, 2, 5
      %s462 = smul.u32 %s461, 2
      %s463 = scalar_lea.vmem %s220, %s462
      %v464 = vld [vmem:[%s463] sm:$0x3]
      %v465 = vsel %vm248, %v457, 0
      %467 = vmatprep.subr.mxu0 0.0
      %468 = vmatpush1.msra.mxu0 0.0
      %469 = vmatprep.subr.mxu0 0.0
      %470 = vmatpush1.msra.mxu0 0.0
      %471 = vmatprep.subr.mxu0 0.0
      %472 = vmatpush1.msra.mxu0 0.0
      %473 = vmatprep.subr.mxu0 0.0
      %474 = vmatpush1.msra.mxu0 0.0
      %475 = vmatprep.subr.mxu0 0.0
      %476 = vmatpush1.msra.mxu0 0.0
      %477 = vmatprep.subr.mxu0 0.0
      %478 = vmatpush1.msra.mxu0 0.0
      %479 = vmatprep.subr.mxu0 0.0
      %480 = vmatpush1.msra.mxu0 0.0
      %481 = vmatprep.subr.mxu0 0.0
      %482 = vmatpush1.msra.mxu0 0.0
      %483 = vmatprep.subr.mxu0 0.0
      %484 = vmatpush1.msra.mxu0 0.0
      %485 = vmatprep.subr.mxu0 0.0
      %486 = vmatpush1.msra.mxu0 0.0
      %487 = vmatprep.subr.mxu0 0.0
      %488 = vmatpush1.msra.mxu0 0.0
      %489 = vmatprep.subr.mxu0 0.0
      %490 = vmatpush1.msra.mxu0 0.0
      %491 = vmatprep.subr.mxu0 0.0
      %492 = vmatpush1.msra.mxu0 %v242
      %493 = vmatprep.subr.mxu0 0.0
      %494 = vmatpush1.msra.mxu0 %v241
      %495 = vmatprep.subr.mxu0 0.0
      %496 = vmatpush1.msra.mxu0 %v240
      %497 = vmatprep.subr.mxu0 0.0
      %498 = vmatpush1.msra.mxu0 %v239
      %499 = vmatprep.subr.mxu0 0.0
      %500 = vmatpush2.msra.mxu0 0.0
      %501 = vmatprep.subr.mxu0 0.0
      %502 = vmatpush2.msra.mxu0 0.0
      %503 = vmatprep.subr.mxu0 0.0
      %504 = vmatpush2.msra.mxu0 0.0
      %505 = vmatprep.subr.mxu0 0.0
      %506 = vmatpush2.msra.mxu0 0.0
      %507 = vmatprep.subr.mxu0 0.0
      %508 = vmatpush2.msra.mxu0 0.0
      %509 = vmatprep.subr.mxu0 0.0
      %510 = vmatpush2.msra.mxu0 0.0
      %511 = vmatprep.subr.mxu0 0.0
      %512 = vmatpush2.msra.mxu0 0.0
      %513 = vmatprep.subr.mxu0 0.0
      %514 = vmatpush2.msra.mxu0 0.0
      %515 = vmatprep.subr.mxu0 0.0
      %516 = vmatpush2.msra.mxu0 0.0
      %517 = vmatprep.subr.mxu0 0.0
      %518 = vmatpush2.msra.mxu0 0.0
      %519 = vmatprep.subr.mxu0 0.0
      %520 = vmatpush2.msra.mxu0 0.0
      %521 = vmatprep.subr.mxu0 0.0
      %522 = vmatpush2.msra.mxu0 0.0
      %523 = vmatprep.subr.mxu0 0.0
      %524 = vmatpush2.msra.mxu0 0.0
      %525 = vmatprep.subr.mxu0 0.0
      %526 = vmatpush2.msra.mxu0 0.0
      %527 = vmatprep.subr.mxu0 0.0
      %528 = vmatpush2.msra.mxu0 0.0
      %529 = vmatprep.subr.mxu0 0.0
      %530 = vmatpush2.msra.mxu0 0.0
      %531 = vmatprep.mubr.f32.mxu0 0.0
      %532 = vmatmul.mubr.f32.gmra.mxu0 %v465
      %v533 = vpop.f32.mrf.mxu0
      %v534 = vadd.f32 0.0, %v533
      %v535 = vpop.f32.mrf.mxu0
      %536 = vdwg.mxu0
      %v537 = vadd.f32 %v464, %v534
      %v538 = vxor.u32 %v537, 2147483648
      %v539 = vmul.f32 %v538, 1.442695
      %v540 = vpow.pop %v539
      %v541 = vadd.f32 %v540, 1.0
      %v542 = vrcp.pop %v541
      %v543 = vmul.f32 1.0, %v542
      %v544 = vtanh.pop %v537
      %v545 = vmul.f32 %v543, %v448
      %547 = vrot.lane.b32.xlu0 %v544, 64
      %v548 = vpop.permute.xlu0 %547
      %v550 = vmul.f32 %v543, %v548
      %552 = vrot.lane.b32.xlu0 %v550, 32
      %v553 = vpop.permute.xlu0 %552
      %v555 = vadd.f32 %v545, %v553
      %v556 = vtanh.pop %v555
      %558 = vrot.lane.b32.xlu0 %v556, 64
      %v559 = vpop.permute.xlu0 %558
      %v561 = vmul.f32 %v543, %v559
      %563 = vrot.lane.b32.xlu0 %v561, 32
      %v564 = vpop.permute.xlu0 %563
      %s566 = scalar_lea.vmem %s230, %s462
      %567 = vst.msk [vmem:[%s566] sm:$0x3] %vm352, %v564
      %s568 = scalar_select %p243, 3, 4
      %s569 = smul.u32 %s568, 2
      %s570 = scalar_lea.vmem %s220, %s569
      %v571 = vld [vmem:[%s570] sm:$0x3]
      %v572 = vsel %vm248, %v564, 0
      %574 = vmatprep.subr.mxu0 0.0
      %575 = vmatpush1.msra.mxu0 0.0
      %576 = vmatprep.subr.mxu0 0.0
      %577 = vmatpush1.msra.mxu0 0.0
      %578 = vmatprep.subr.mxu0 0.0
      %579 = vmatpush1.msra.mxu0 0.0
      %580 = vmatprep.subr.mxu0 0.0
      %581 = vmatpush1.msra.mxu0 0.0
      %582 = vmatprep.subr.mxu0 0.0
      %583 = vmatpush1.msra.mxu0 0.0
      %584 = vmatprep.subr.mxu0 0.0
      %585 = vmatpush1.msra.mxu0 0.0
      %586 = vmatprep.subr.mxu0 0.0
      %587 = vmatpush1.msra.mxu0 0.0
      %588 = vmatprep.subr.mxu0 0.0
      %589 = vmatpush1.msra.mxu0 0.0
      %590 = vmatprep.subr.mxu0 0.0
      %591 = vmatpush1.msra.mxu0 0.0
      %592 = vmatprep.subr.mxu0 0.0
      %593 = vmatpush1.msra.mxu0 0.0
      %594 = vmatprep.subr.mxu0 0.0
      %595 = vmatpush1.msra.mxu0 0.0
      %596 = vmatprep.subr.mxu0 0.0
      %597 = vmatpush1.msra.mxu0 0.0
      %598 = vmatprep.subr.mxu0 0.0
      %599 = vmatpush1.msra.mxu0 %v242
      %600 = vmatprep.subr.mxu0 0.0
      %601 = vmatpush1.msra.mxu0 %v241
      %602 = vmatprep.subr.mxu0 0.0
      %603 = vmatpush1.msra.mxu0 %v240
      %604 = vmatprep.subr.mxu0 0.0
      %605 = vmatpush1.msra.mxu0 %v239
      %606 = vmatprep.subr.mxu0 0.0
      %607 = vmatpush2.msra.mxu0 0.0
      %608 = vmatprep.subr.mxu0 0.0
      %609 = vmatpush2.msra.mxu0 0.0
      %610 = vmatprep.subr.mxu0 0.0
      %611 = vmatpush2.msra.mxu0 0.0
      %612 = vmatprep.subr.mxu0 0.0
      %613 = vmatpush2.msra.mxu0 0.0
      %614 = vmatprep.subr.mxu0 0.0
      %615 = vmatpush2.msra.mxu0 0.0
      %616 = vmatprep.subr.mxu0 0.0
      %617 = vmatpush2.msra.mxu0 0.0
      %618 = vmatprep.subr.mxu0 0.0
      %619 = vmatpush2.msra.mxu0 0.0
      %620 = vmatprep.subr.mxu0 0.0
      %621 = vmatpush2.msra.mxu0 0.0
      %622 = vmatprep.subr.mxu0 0.0
      %623 = vmatpush2.msra.mxu0 0.0
      %624 = vmatprep.subr.mxu0 0.0
      %625 = vmatpush2.msra.mxu0 0.0
      %626 = vmatprep.subr.mxu0 0.0
      %627 = vmatpush2.msra.mxu0 0.0
      %628 = vmatprep.subr.mxu0 0.0
      %629 = vmatpush2.msra.mxu0 0.0
      %630 = vmatprep.subr.mxu0 0.0
      %631 = vmatpush2.msra.mxu0 0.0
      %632 = vmatprep.subr.mxu0 0.0
      %633 = vmatpush2.msra.mxu0 0.0
      %634 = vmatprep.subr.mxu0 0.0
      %635 = vmatpush2.msra.mxu0 0.0
      %636 = vmatprep.subr.mxu0 0.0
      %637 = vmatpush2.msra.mxu0 0.0
      %638 = vmatprep.mubr.f32.mxu0 0.0
      %639 = vmatmul.mubr.f32.gmra.mxu0 %v572
      %v640 = vpop.f32.mrf.mxu0
      %v641 = vadd.f32 0.0, %v640
      %v642 = vpop.f32.mrf.mxu0
      %643 = vdwg.mxu0
      %v644 = vadd.f32 %v571, %v641
      %v645 = vxor.u32 %v644, 2147483648
      %v646 = vmul.f32 %v645, 1.442695
      %v647 = vpow.pop %v646
      %v648 = vadd.f32 %v647, 1.0
      %v649 = vrcp.pop %v648
      %v650 = vmul.f32 1.0, %v649
      %v651 = vtanh.pop %v644
      %v652 = vmul.f32 %v650, %v555
      %654 = vrot.lane.b32.xlu0 %v651, 64
      %v655 = vpop.permute.xlu0 %654
      %v657 = vmul.f32 %v650, %v655
      %659 = vrot.lane.b32.xlu0 %v657, 32
      %v660 = vpop.permute.xlu0 %659
      %v662 = vadd.f32 %v652, %v660
      %v663 = vtanh.pop %v662
      %665 = vrot.lane.b32.xlu0 %v663, 64
      %v666 = vpop.permute.xlu0 %665
      %v668 = vmul.f32 %v650, %v666
      %670 = vrot.lane.b32.xlu0 %v668, 32
      %v671 = vpop.permute.xlu0 %670
      %s673 = scalar_lea.vmem %s230, %s569
      %674 = vst.msk [vmem:[%s673] sm:$0x3] %vm352, %v671
      %s675 = scalar_select %p243, 4, 3
      %s676 = smul.u32 %s675, 2
      %s677 = scalar_lea.vmem %s220, %s676
      %v678 = vld [vmem:[%s677] sm:$0x3]
      %v679 = vsel %vm248, %v671, 0
      %681 = vmatprep.subr.mxu0 0.0
      %682 = vmatpush1.msra.mxu0 0.0
      %683 = vmatprep.subr.mxu0 0.0
      %684 = vmatpush1.msra.mxu0 0.0
      %685 = vmatprep.subr.mxu0 0.0
      %686 = vmatpush1.msra.mxu0 0.0
      %687 = vmatprep.subr.mxu0 0.0
      %688 = vmatpush1.msra.mxu0 0.0
      %689 = vmatprep.subr.mxu0 0.0
      %690 = vmatpush1.msra.mxu0 0.0
      %691 = vmatprep.subr.mxu0 0.0
      %692 = vmatpush1.msra.mxu0 0.0
      %693 = vmatprep.subr.mxu0 0.0
      %694 = vmatpush1.msra.mxu0 0.0
      %695 = vmatprep.subr.mxu0 0.0
      %696 = vmatpush1.msra.mxu0 0.0
      %697 = vmatprep.subr.mxu0 0.0
      %698 = vmatpush1.msra.mxu0 0.0
      %699 = vmatprep.subr.mxu0 0.0
      %700 = vmatpush1.msra.mxu0 0.0
      %701 = vmatprep.subr.mxu0 0.0
      %702 = vmatpush1.msra.mxu0 0.0
      %703 = vmatprep.subr.mxu0 0.0
      %704 = vmatpush1.msra.mxu0 0.0
      %705 = vmatprep.subr.mxu0 0.0
      %706 = vmatpush1.msra.mxu0 %v242
      %707 = vmatprep.subr.mxu0 0.0
      %708 = vmatpush1.msra.mxu0 %v241
      %709 = vmatprep.subr.mxu0 0.0
      %710 = vmatpush1.msra.mxu0 %v240
      %711 = vmatprep.subr.mxu0 0.0
      %712 = vmatpush1.msra.mxu0 %v239
      %713 = vmatprep.subr.mxu0 0.0
      %714 = vmatpush2.msra.mxu0 0.0
      %715 = vmatprep.subr.mxu0 0.0
      %716 = vmatpush2.msra.mxu0 0.0
      %717 = vmatprep.subr.mxu0 0.0
      %718 = vmatpush2.msra.mxu0 0.0
      %719 = vmatprep.subr.mxu0 0.0
      %720 = vmatpush2.msra.mxu0 0.0
      %721 = vmatprep.subr.mxu0 0.0
      %722 = vmatpush2.msra.mxu0 0.0
      %723 = vmatprep.subr.mxu0 0.0
      %724 = vmatpush2.msra.mxu0 0.0
      %725 = vmatprep.subr.mxu0 0.0
      %726 = vmatpush2.msra.mxu0 0.0
      %727 = vmatprep.subr.mxu0 0.0
      %728 = vmatpush2.msra.mxu0 0.0
      %729 = vmatprep.subr.mxu0 0.0
      %730 = vmatpush2.msra.mxu0 0.0
      %731 = vmatprep.subr.mxu0 0.0
      %732 = vmatpush2.msra.mxu0 0.0
      %733 = vmatprep.subr.mxu0 0.0
      %734 = vmatpush2.msra.mxu0 0.0
      %735 = vmatprep.subr.mxu0 0.0
      %736 = vmatpush2.msra.mxu0 0.0
      %737 = vmatprep.subr.mxu0 0.0
      %738 = vmatpush2.msra.mxu0 0.0
      %739 = vmatprep.subr.mxu0 0.0
      %740 = vmatpush2.msra.mxu0 0.0
      %741 = vmatprep.subr.mxu0 0.0
      %742 = vmatpush2.msra.mxu0 0.0
      %743 = vmatprep.subr.mxu0 0.0
      %744 = vmatpush2.msra.mxu0 0.0
      %745 = vmatprep.mubr.f32.mxu0 0.0
      %746 = vmatmul.mubr.f32.gmra.mxu0 %v679
      %v747 = vpop.f32.mrf.mxu0
      %v748 = vadd.f32 0.0, %v747
      %v749 = vpop.f32.mrf.mxu0
      %750 = vdwg.mxu0
      %v751 = vadd.f32 %v678, %v748
      %v752 = vxor.u32 %v751, 2147483648
      %v753 = vmul.f32 %v752, 1.442695
      %v754 = vpow.pop %v753
      %v755 = vadd.f32 %v754, 1.0
      %v756 = vrcp.pop %v755
      %v757 = vmul.f32 1.0, %v756
      %v758 = vtanh.pop %v751
      %v759 = vmul.f32 %v757, %v662
      %761 = vrot.lane.b32.xlu0 %v758, 64
      %v762 = vpop.permute.xlu0 %761
      %v764 = vmul.f32 %v757, %v762
      %766 = vrot.lane.b32.xlu0 %v764, 32
      %v767 = vpop.permute.xlu0 %766
      %v769 = vadd.f32 %v759, %v767
      %v770 = vtanh.pop %v769
      %772 = vrot.lane.b32.xlu0 %v770, 64
      %v773 = vpop.permute.xlu0 %772
      %v775 = vmul.f32 %v757, %v773
      %777 = vrot.lane.b32.xlu0 %v775, 32
      %v778 = vpop.permute.xlu0 %777
      %s780 = scalar_lea.vmem %s230, %s676
      %781 = vst.msk [vmem:[%s780] sm:$0x3] %vm352, %v778
      %s782 = scalar_select %p243, 5, 2
      %s783 = smul.u32 %s782, 2
      %s784 = scalar_lea.vmem %s220, %s783
      %v785 = vld [vmem:[%s784] sm:$0x3]
      %v786 = vsel %vm248, %v778, 0
      %788 = vmatprep.subr.mxu0 0.0
      %789 = vmatpush1.msra.mxu0 0.0
      %790 = vmatprep.subr.mxu0 0.0
      %791 = vmatpush1.msra.mxu0 0.0
      %792 = vmatprep.subr.mxu0 0.0
      %793 = vmatpush1.msra.mxu0 0.0
      %794 = vmatprep.subr.mxu0 0.0
      %795 = vmatpush1.msra.mxu0 0.0
      %796 = vmatprep.subr.mxu0 0.0
      %797 = vmatpush1.msra.mxu0 0.0
      %798 = vmatprep.subr.mxu0 0.0
      %799 = vmatpush1.msra.mxu0 0.0
      %800 = vmatprep.subr.mxu0 0.0
      %801 = vmatpush1.msra.mxu0 0.0
      %802 = vmatprep.subr.mxu0 0.0
      %803 = vmatpush1.msra.mxu0 0.0
      %804 = vmatprep.subr.mxu0 0.0
      %805 = vmatpush1.msra.mxu0 0.0
      %806 = vmatprep.subr.mxu0 0.0
      %807 = vmatpush1.msra.mxu0 0.0
      %808 = vmatprep.subr.mxu0 0.0
      %809 = vmatpush1.msra.mxu0 0.0
      %810 = vmatprep.subr.mxu0 0.0
      %811 = vmatpush1.msra.mxu0 0.0
      %812 = vmatprep.subr.mxu0 0.0
      %813 = vmatpush1.msra.mxu0 %v242
      %814 = vmatprep.subr.mxu0 0.0
      %815 = vmatpush1.msra.mxu0 %v241
      %816 = vmatprep.subr.mxu0 0.0
      %817 = vmatpush1.msra.mxu0 %v240
      %818 = vmatprep.subr.mxu0 0.0
      %819 = vmatpush1.msra.mxu0 %v239
      %820 = vmatprep.subr.mxu0 0.0
      %821 = vmatpush2.msra.mxu0 0.0
      %822 = vmatprep.subr.mxu0 0.0
      %823 = vmatpush2.msra.mxu0 0.0
      %824 = vmatprep.subr.mxu0 0.0
      %825 = vmatpush2.msra.mxu0 0.0
      %826 = vmatprep.subr.mxu0 0.0
      %827 = vmatpush2.msra.mxu0 0.0
      %828 = vmatprep.subr.mxu0 0.0
      %829 = vmatpush2.msra.mxu0 0.0
      %830 = vmatprep.subr.mxu0 0.0
      %831 = vmatpush2.msra.mxu0 0.0
      %832 = vmatprep.subr.mxu0 0.0
      %833 = vmatpush2.msra.mxu0 0.0
      %834 = vmatprep.subr.mxu0 0.0
      %835 = vmatpush2.msra.mxu0 0.0
      %836 = vmatprep.subr.mxu0 0.0
      %837 = vmatpush2.msra.mxu0 0.0
      %838 = vmatprep.subr.mxu0 0.0
      %839 = vmatpush2.msra.mxu0 0.0
      %840 = vmatprep.subr.mxu0 0.0
      %841 = vmatpush2.msra.mxu0 0.0
      %842 = vmatprep.subr.mxu0 0.0
      %843 = vmatpush2.msra.mxu0 0.0
      %844 = vmatprep.subr.mxu0 0.0
      %845 = vmatpush2.msra.mxu0 0.0
      %846 = vmatprep.subr.mxu0 0.0
      %847 = vmatpush2.msra.mxu0 0.0
      %848 = vmatprep.subr.mxu0 0.0
      %849 = vmatpush2.msra.mxu0 0.0
      %850 = vmatprep.subr.mxu0 0.0
      %851 = vmatpush2.msra.mxu0 0.0
      %852 = vmatprep.mubr.f32.mxu0 0.0
      %853 = vmatmul.mubr.f32.gmra.mxu0 %v786
      %v854 = vpop.f32.mrf.mxu0
      %v855 = vadd.f32 0.0, %v854
      %v856 = vpop.f32.mrf.mxu0
      %857 = vdwg.mxu0
      %v858 = vadd.f32 %v785, %v855
      %v859 = vxor.u32 %v858, 2147483648
      %v860 = vmul.f32 %v859, 1.442695
      %v861 = vpow.pop %v860
      %v862 = vadd.f32 %v861, 1.0
      %v863 = vrcp.pop %v862
      %v864 = vmul.f32 1.0, %v863
      %v865 = vtanh.pop %v858
      %v866 = vmul.f32 %v864, %v769
      %868 = vrot.lane.b32.xlu0 %v865, 64
      %v869 = vpop.permute.xlu0 %868
      %v871 = vmul.f32 %v864, %v869
      %873 = vrot.lane.b32.xlu0 %v871, 32
      %v874 = vpop.permute.xlu0 %873
      %v876 = vadd.f32 %v866, %v874
      %v877 = vtanh.pop %v876
      %879 = vrot.lane.b32.xlu0 %v877, 64
      %v880 = vpop.permute.xlu0 %879
      %v882 = vmul.f32 %v864, %v880
      %884 = vrot.lane.b32.xlu0 %v882, 32
      %v885 = vpop.permute.xlu0 %884
      %s887 = scalar_lea.vmem %s230, %s783
      %888 = vst.msk [vmem:[%s887] sm:$0x3] %vm352, %v885
      %s889 = scalar_select %p243, 6, 1
      %s890 = smul.u32 %s889, 2
      %s891 = scalar_lea.vmem %s220, %s890
      %v892 = vld [vmem:[%s891] sm:$0x3]
      %v893 = vsel %vm248, %v885, 0
      %895 = vmatprep.subr.mxu0 0.0
      %896 = vmatpush1.msra.mxu0 0.0
      %897 = vmatprep.subr.mxu0 0.0
      %898 = vmatpush1.msra.mxu0 0.0
      %899 = vmatprep.subr.mxu0 0.0
      %900 = vmatpush1.msra.mxu0 0.0
      %901 = vmatprep.subr.mxu0 0.0
      %902 = vmatpush1.msra.mxu0 0.0
      %903 = vmatprep.subr.mxu0 0.0
      %904 = vmatpush1.msra.mxu0 0.0
      %905 = vmatprep.subr.mxu0 0.0
      %906 = vmatpush1.msra.mxu0 0.0
      %907 = vmatprep.subr.mxu0 0.0
      %908 = vmatpush1.msra.mxu0 0.0
      %909 = vmatprep.subr.mxu0 0.0
      %910 = vmatpush1.msra.mxu0 0.0
      %911 = vmatprep.subr.mxu0 0.0
      %912 = vmatpush1.msra.mxu0 0.0
      %913 = vmatprep.subr.mxu0 0.0
      %914 = vmatpush1.msra.mxu0 0.0
      %915 = vmatprep.subr.mxu0 0.0
      %916 = vmatpush1.msra.mxu0 0.0
      %917 = vmatprep.subr.mxu0 0.0
      %918 = vmatpush1.msra.mxu0 0.0
      %919 = vmatprep.subr.mxu0 0.0
      %920 = vmatpush1.msra.mxu0 %v242
      %921 = vmatprep.subr.mxu0 0.0
      %922 = vmatpush1.msra.mxu0 %v241
      %923 = vmatprep.subr.mxu0 0.0
      %924 = vmatpush1.msra.mxu0 %v240
      %925 = vmatprep.subr.mxu0 0.0
      %926 = vmatpush1.msra.mxu0 %v239
      %927 = vmatprep.subr.mxu0 0.0
      %928 = vmatpush2.msra.mxu0 0.0
      %929 = vmatprep.subr.mxu0 0.0
      %930 = vmatpush2.msra.mxu0 0.0
      %931 = vmatprep.subr.mxu0 0.0
      %932 = vmatpush2.msra.mxu0 0.0
      %933 = vmatprep.subr.mxu0 0.0
      %934 = vmatpush2.msra.mxu0 0.0
      %935 = vmatprep.subr.mxu0 0.0
      %936 = vmatpush2.msra.mxu0 0.0
      %937 = vmatprep.subr.mxu0 0.0
      %938 = vmatpush2.msra.mxu0 0.0
      %939 = vmatprep.subr.mxu0 0.0
      %940 = vmatpush2.msra.mxu0 0.0
      %941 = vmatprep.subr.mxu0 0.0
      %942 = vmatpush2.msra.mxu0 0.0
      %943 = vmatprep.subr.mxu0 0.0
      %944 = vmatpush2.msra.mxu0 0.0
      %945 = vmatprep.subr.mxu0 0.0
      %946 = vmatpush2.msra.mxu0 0.0
      %947 = vmatprep.subr.mxu0 0.0
      %948 = vmatpush2.msra.mxu0 0.0
      %949 = vmatprep.subr.mxu0 0.0
      %950 = vmatpush2.msra.mxu0 0.0
      %951 = vmatprep.subr.mxu0 0.0
      %952 = vmatpush2.msra.mxu0 0.0
      %953 = vmatprep.subr.mxu0 0.0
      %954 = vmatpush2.msra.mxu0 0.0
      %955 = vmatprep.subr.mxu0 0.0
      %956 = vmatpush2.msra.mxu0 0.0
      %957 = vmatprep.subr.mxu0 0.0
      %958 = vmatpush2.msra.mxu0 0.0
      %959 = vmatprep.mubr.f32.mxu0 0.0
      %960 = vmatmul.mubr.f32.gmra.mxu0 %v893
      %v961 = vpop.f32.mrf.mxu0
      %v962 = vadd.f32 0.0, %v961
      %v963 = vpop.f32.mrf.mxu0
      %964 = vdwg.mxu0
      %v965 = vadd.f32 %v892, %v962
      %v966 = vxor.u32 %v965, 2147483648
      %v967 = vmul.f32 %v966, 1.442695
      %v968 = vpow.pop %v967
      %v969 = vadd.f32 %v968, 1.0
      %v970 = vrcp.pop %v969
      %v971 = vmul.f32 1.0, %v970
      %v972 = vtanh.pop %v965
      %v973 = vmul.f32 %v971, %v876
      %975 = vrot.lane.b32.xlu0 %v972, 64
      %v976 = vpop.permute.xlu0 %975
      %v978 = vmul.f32 %v971, %v976
      %980 = vrot.lane.b32.xlu0 %v978, 32
      %v981 = vpop.permute.xlu0 %980
      %v983 = vadd.f32 %v973, %v981
      %v984 = vtanh.pop %v983
      %986 = vrot.lane.b32.xlu0 %v984, 64
      %v987 = vpop.permute.xlu0 %986
      %v989 = vmul.f32 %v971, %v987
      %991 = vrot.lane.b32.xlu0 %v989, 32
      %v992 = vpop.permute.xlu0 %991
      %s994 = scalar_lea.vmem %s230, %s890
      %995 = vst.msk [vmem:[%s994] sm:$0x3] %vm352, %v992
      %s996 = scalar_select %p243, 7, 0
      %s997 = smul.u32 %s996, 2
      %s998 = scalar_lea.vmem %s220, %s997
      %v999 = vld [vmem:[%s998] sm:$0x3]
      %v1000 = vsel %vm248, %v992, 0
      %1002 = vmatprep.subr.mxu0 0.0
      %1003 = vmatpush1.msra.mxu0 0.0
      %1004 = vmatprep.subr.mxu0 0.0
      %1005 = vmatpush1.msra.mxu0 0.0
      %1006 = vmatprep.subr.mxu0 0.0
      %1007 = vmatpush1.msra.mxu0 0.0
      %1008 = vmatprep.subr.mxu0 0.0
      %1009 = vmatpush1.msra.mxu0 0.0
      %1010 = vmatprep.subr.mxu0 0.0
      %1011 = vmatpush1.msra.mxu0 0.0
      %1012 = vmatprep.subr.mxu0 0.0
      %1013 = vmatpush1.msra.mxu0 0.0
      %1014 = vmatprep.subr.mxu0 0.0
      %1015 = vmatpush1.msra.mxu0 0.0
      %1016 = vmatprep.subr.mxu0 0.0
      %1017 = vmatpush1.msra.mxu0 0.0
      %1018 = vmatprep.subr.mxu0 0.0
      %1019 = vmatpush1.msra.mxu0 0.0
      %1020 = vmatprep.subr.mxu0 0.0
      %1021 = vmatpush1.msra.mxu0 0.0
      %1022 = vmatprep.subr.mxu0 0.0
      %1023 = vmatpush1.msra.mxu0 0.0
      %1024 = vmatprep.subr.mxu0 0.0
      %1025 = vmatpush1.msra.mxu0 0.0
      %1026 = vmatprep.subr.mxu0 0.0
      %1027 = vmatpush1.msra.mxu0 %v242
      %1028 = vmatprep.subr.mxu0 0.0
      %1029 = vmatpush1.msra.mxu0 %v241
      %1030 = vmatprep.subr.mxu0 0.0
      %1031 = vmatpush1.msra.mxu0 %v240
      %1032 = vmatprep.subr.mxu0 0.0
      %1033 = vmatpush1.msra.mxu0 %v239
      %1034 = vmatprep.subr.mxu0 0.0
      %1035 = vmatpush2.msra.mxu0 0.0
      %1036 = vmatprep.subr.mxu0 0.0
      %1037 = vmatpush2.msra.mxu0 0.0
      %1038 = vmatprep.subr.mxu0 0.0
      %1039 = vmatpush2.msra.mxu0 0.0
      %1040 = vmatprep.subr.mxu0 0.0
      %1041 = vmatpush2.msra.mxu0 0.0
      %1042 = vmatprep.subr.mxu0 0.0
      %1043 = vmatpush2.msra.mxu0 0.0
      %1044 = vmatprep.subr.mxu0 0.0
      %1045 = vmatpush2.msra.mxu0 0.0
      %1046 = vmatprep.subr.mxu0 0.0
      %1047 = vmatpush2.msra.mxu0 0.0
      %1048 = vmatprep.subr.mxu0 0.0
      %1049 = vmatpush2.msra.mxu0 0.0
      %1050 = vmatprep.subr.mxu0 0.0
      %1051 = vmatpush2.msra.mxu0 0.0
      %1052 = vmatprep.subr.mxu0 0.0
      %1053 = vmatpush2.msra.mxu0 0.0
      %1054 = vmatprep.subr.mxu0 0.0
      %1055 = vmatpush2.msra.mxu0 0.0
      %1056 = vmatprep.subr.mxu0 0.0
      %1057 = vmatpush2.msra.mxu0 0.0
      %1058 = vmatprep.subr.mxu0 0.0
      %1059 = vmatpush2.msra.mxu0 0.0
      %1060 = vmatprep.subr.mxu0 0.0
      %1061 = vmatpush2.msra.mxu0 0.0
      %1062 = vmatprep.subr.mxu0 0.0
      %1063 = vmatpush2.msra.mxu0 0.0
      %1064 = vmatprep.subr.mxu0 0.0
      %1065 = vmatpush2.msra.mxu0 0.0
      %1066 = vmatprep.mubr.f32.mxu0 0.0
      %1067 = vmatmul.mubr.f32.gmra.mxu0 %v1000
      %v1068 = vpop.f32.mrf.mxu0
      %v1069 = vadd.f32 0.0, %v1068
      %v1070 = vpop.f32.mrf.mxu0
      %1071 = vdwg.mxu0
      %v1072 = vadd.f32 %v999, %v1069
      %v1073 = vxor.u32 %v1072, 2147483648
      %v1074 = vmul.f32 %v1073, 1.442695
      %v1075 = vpow.pop %v1074
      %v1076 = vadd.f32 %v1075, 1.0
      %v1077 = vrcp.pop %v1076
      %v1078 = vmul.f32 1.0, %v1077
      %v1079 = vtanh.pop %v1072
      %v1080 = vmul.f32 %v1078, %v983
      %1082 = vrot.lane.b32.xlu0 %v1079, 64
      %v1083 = vpop.permute.xlu0 %1082
      %v1085 = vmul.f32 %v1078, %v1083
      %1087 = vrot.lane.b32.xlu0 %v1085, 32
      %v1088 = vpop.permute.xlu0 %1087
      %v1090 = vadd.f32 %v1080, %v1088
      %v1091 = vtanh.pop %v1090
      %1093 = vrot.lane.b32.xlu0 %v1091, 64
      %v1094 = vpop.permute.xlu0 %1093
      %v1096 = vmul.f32 %v1078, %v1094
      %1098 = vrot.lane.b32.xlu0 %v1096, 32
      %v1099 = vpop.permute.xlu0 %1098
      %s1101 = scalar_lea.vmem %s230, %s997
      %1102 = vst.msk [vmem:[%s1101] sm:$0x3] %vm352, %v1099
      %1103 = vst.msk [vmem:[%s234] sm:$0x3] %vm352, %v1099
      %1105 = vrot.lane.b32.xlu0 %v1090, 96
      %v1106 = vpop.permute.xlu0 %1105
      %1108 = vst.msk [vmem:[%s238] sm:$0x3] %vm352, %v1106
      %p1109 = scmp.lt.s32.totalorder %s16, 1
      %s1110 = scalar_select %p1109, %s16, 1
      %s1111 = smul.addr %s1110, 8
      %s1112 = smul.addr %s1111, 2
      %s1113 = scalar_lea.vmem %s2, %s1112
      %p1114 = scmp.lt.s32.totalorder %s16, 1
      %s1115 = scalar_select %p1114, %s16, 1
      %s1116 = smul.addr %s1115, 2
      %s1117 = scalar_lea.vmem %s3, %s1116
      %p1118 = scmp.lt.s32.totalorder %s16, 1
      %s1119 = scalar_select %p1118, %s16, 1
      %s1120 = smul.addr %s1119, 2
      %s1121 = scalar_lea.vmem %s4, %s1120
      // Predicated region
      $region29: #{encoder_rnn_forward.3} parent=27 // pred_check
        %p1122 = pneg %p86
      $region30: #{encoder_rnn_forward.3} parent=27 // pred_check_branch
        %1124 = sbr.rel (%p1122) target = $region32
      $region31: #{encoder_rnn_forward.3} parent=27 // pred_region
        _
      $region32: #{encoder_rnn_forward.3} parent=27 // pred_fallthru
        _
      // Predicated region
      $region33: #{encoder_rnn_forward.3} parent=27 // pred_check
        %p1125 = pneg %p112
      $region34: #{encoder_rnn_forward.3} parent=27 // pred_check_branch
        %1127 = sbr.rel (%p1125) target = $region36
      $region35: #{encoder_rnn_forward.3} parent=27 // pred_region
        _
      $region36: #{encoder_rnn_forward.3} parent=27 // pred_fallthru
        _
      // Predicated region
      $region37: #{encoder_rnn_forward.3} parent=27 // pred_check
        %p1128 = pneg %p138
      $region38: #{encoder_rnn_forward.3} parent=27 // pred_check_branch
        %1130 = sbr.rel (%p1128) target = $region40
      $region39: #{encoder_rnn_forward.3} parent=27 // pred_region
        _
      $region40: #{encoder_rnn_forward.3} parent=27 // pred_fallthru
        _
    $region28: #{encoder_rnn_forward.3} parent=5 // pred_fallthru
      _
    %p1131 = scmp.le.s32.totalorder 2, %s11
    // Predicated region
    $region41: #{encoder_rnn_forward.3} parent=5 // pred_check
      %p1132 = pneg %p1131
    $region42: #{encoder_rnn_forward.3} parent=5 // pred_check_branch
      %1134 = sbr.rel (%p1132) target = $region44
    $region43: #{encoder_rnn_forward.3} parent=5 // pred_region
      %s1135 = ssub.s32 %s11, 2
      // Predicated region
      $region45: #{encoder_rnn_forward.3} parent=43 // pred_check
        %p1136 = pneg %p92
      $region46: #{encoder_rnn_forward.3} parent=43 // pred_check_branch
        %1138 = sbr.rel (%p1136) target = $region48
      $region47: #{encoder_rnn_forward.3} parent=43 // pred_region
        %p1139 = scmp.lt.s32.totalorder %s17, 1
        %s1140 = scalar_select %p1139, %s17, 1
        %s1141 = smul.addr %s1140, 8
        %s1142 = smul.addr %s1141, 2
        %s1143 = scalar_lea.vmem %s2, %s1142
      $region48: #{encoder_rnn_forward.3} parent=43 // pred_fallthru
        _
      // Predicated region
      $region49: #{encoder_rnn_forward.3} parent=43 // pred_check
        %p1144 = pneg %p118
      $region50: #{encoder_rnn_forward.3} parent=43 // pred_check_branch
        %1146 = sbr.rel (%p1144) target = $region52
      $region51: #{encoder_rnn_forward.3} parent=43 // pred_region
        %p1147 = scmp.lt.s32.totalorder %s17, 1
        %s1148 = scalar_select %p1147, %s17, 1
        %s1149 = smul.addr %s1148, 2
        %s1150 = scalar_lea.vmem %s3, %s1149
      $region52: #{encoder_rnn_forward.3} parent=43 // pred_fallthru
        _
      // Predicated region
      $region53: #{encoder_rnn_forward.3} parent=43 // pred_check
        %p1151 = pneg %p144
      $region54: #{encoder_rnn_forward.3} parent=43 // pred_check_branch
        %1153 = sbr.rel (%p1151) target = $region56
      $region55: #{encoder_rnn_forward.3} parent=43 // pred_region
        %p1154 = scmp.lt.s32.totalorder %s17, 1
        %s1155 = scalar_select %p1154, %s17, 1
        %s1156 = smul.addr %s1155, 2
        %s1157 = scalar_lea.vmem %s4, %s1156
      $region56: #{encoder_rnn_forward.3} parent=43 // pred_fallthru
        _
    $region44: #{encoder_rnn_forward.3} parent=5 // pred_fallthru
      _
  $region6: #{encoder_rnn_forward.3} parent=0 // loop_footer
    %s15 = sadd.s32 1, %s11
  $region7: #{encoder_rnn_forward.3} parent=0 // loop_footer_branch
    %10 = sbr.rel target = $region3
  $region8: #{encoder_rnn_forward.3} parent=0 // loop_exit
    _

</llo_original>
